<compile_context>
chip_gen: v7x
topology: tpu7x:2x2x1
jax: 0.10.0
libtpu: 0.0.40
codegen_flags: <defaults>
</compile_context>

<pallas_src>
import jax
import jax.numpy as jnp
from jax.experimental import pallas as pl
from jax.experimental.pallas import tpu as pltpu  # noqa: F401  (TPU backend)


HIDDEN1 = 512
HIDDEN2 = 256
BN_EPS = 1e-5

# Static, lane-aligned (multiples of 128) offsets inside the packed f32 slab.
_OFF_S1 = 0                       # dequant scale for w1 (BN fold included)  (512)
_OFF_B1 = _OFF_S1 + HIDDEN1       # folded bias, layer 1                     (512)
_OFF_S2 = _OFF_B1 + HIDDEN1       # dequant scale for w2 (BN fold included)  (256)
_OFF_B2 = _OFF_S2 + HIDDEN2       # folded bias, layer 2                     (256)
_OFF_W3 = _OFF_B2 + HIDDEN2       # final-layer weight row                   (256)
_OFF_B3 = _OFF_W3 + HIDDEN2       # final-layer bias (scalar in a 128 slot)
_VEC_LEN = _OFF_B3 + 128          # 1920 = 15 * 128 lanes


def _mlp_kernel(x_ref, w1_ref, w2_ref, vec_ref, o_ref):
    # ---- Layer 1: Linear(D,512) + BN (folded) + ReLU -----------------------
    # int8 weight -> bf16 is exact; MXU matmul accumulates in f32; the
    # per-column (dequant * BN) scale is a single VPU multiply on the result.
    x_bf = x_ref[...].astype(jnp.bfloat16)
    w1 = w1_ref[...].astype(jnp.bfloat16)
    h = jnp.dot(x_bf, w1, preferred_element_type=jnp.float32)
    h = (h * vec_ref[:, _OFF_S1:_OFF_S1 + HIDDEN1]
         + vec_ref[:, _OFF_B1:_OFF_B1 + HIDDEN1])
    h = jnp.maximum(h, 0.0)

    # ---- Layer 2: Linear(512,256) + BN (folded) + ReLU ----------------------
    w2 = w2_ref[...].astype(jnp.bfloat16)
    h = jnp.dot(h.astype(jnp.bfloat16), w2, preferred_element_type=jnp.float32)
    h = (h * vec_ref[:, _OFF_S2:_OFF_S2 + HIDDEN2]
         + vec_ref[:, _OFF_B2:_OFF_B2 + HIDDEN2])
    h = jnp.maximum(h, 0.0)

    # ---- Layer 3: Linear(256,1) as a VPU multiply + lane reduction ---------
    w3_row = vec_ref[:, _OFF_W3:_OFF_W3 + HIDDEN2]          # (1, 256)
    b3 = vec_ref[:, _OFF_B3:_OFF_B3 + 1]                    # (1, 1)
    logits = jnp.sum(h * w3_row, axis=-1, keepdims=True) + b3

    # Numerically stable sigmoid.
    ez = jnp.exp(-jnp.abs(logits))
    o_ref[...] = jnp.where(logits >= 0.0, 1.0 / (1.0 + ez), ez / (1.0 + ez))


def _full_spec(shape):
    # Whole array resident in VMEM (no tiling; everything fits comfortably).
    return pl.BlockSpec(shape, lambda: tuple(0 for _ in shape))


def prepare_params(params):
    """One-time (out of the hot path) parameter preparation.

    Folds eval-mode BatchNorm into the Linear weights/biases, quantizes the
    two large weight matrices to int8 with per-output-column scales, and packs
    every small per-feature vector into a single lane-aligned f32 slab.
    Call this ONCE; pass its outputs to the forward on every call.
    """
    (w1, b1, g1, beta1, m1, v1,
     w2, b2, g2, beta2, m2, v2,
     w3, b3) = params

    def fold_and_quantize(w, b, g, beta, m, v):
        # y = (x @ w + b) * s + t  ==  x @ (w * s) + (b * s + t),
        # with s = gamma / sqrt(var + eps), t = beta - mean * s.
        s = g / jnp.sqrt(v + BN_EPS)
        t = beta - m * s
        wf = w * s[None, :]
        bf = b * s + t
        # Per-output-column symmetric int8 quantization of the folded weight.
        amax = jnp.max(jnp.abs(wf), axis=0)
        scale = jnp.where(amax > 0.0, amax / 127.0, 1.0)
        wq = jnp.clip(jnp.round(wf / scale[None, :]), -127.0, 127.0).astype(jnp.int8)
        return wq, scale.astype(jnp.float32), bf.astype(jnp.float32)

    w1q, s1, b1f = fold_and_quantize(w1, b1, g1, beta1, m1, v1)
    w2q, s2, b2f = fold_and_quantize(w2, b2, g2, beta2, m2, v2)

    vec = jnp.zeros((1, _VEC_LEN), jnp.float32)
    vec = vec.at[0, _OFF_S1:_OFF_S1 + HIDDEN1].set(s1)
    vec = vec.at[0, _OFF_B1:_OFF_B1 + HIDDEN1].set(b1f)
    vec = vec.at[0, _OFF_S2:_OFF_S2 + HIDDEN2].set(s2)
    vec = vec.at[0, _OFF_B2:_OFF_B2 + HIDDEN2].set(b2f)
    vec = vec.at[0, _OFF_W3:_OFF_W3 + HIDDEN2].set(w3[:, 0].astype(jnp.float32))
    vec = vec.at[0, _OFF_B3].set(b3[0].astype(jnp.float32))

    return w1q, w2q, vec


@jax.jit
def inception_binary_classifier_forward(x, w1q, w2q, vec):
    """x: (B, D) float32 embeddings. Returns (B, 1) sigmoid probabilities.

    w1q/w2q/vec come from prepare_params() (computed once, reused per call).
    """
    B, D = x.shape
    assert w1q.shape == (D, HIDDEN1) and w2q.shape == (HIDDEN1, HIDDEN2)

    flops = 2 * B * D * HIDDEN1 + 2 * B * HIDDEN1 * HIDDEN2 + 2 * B * HIDDEN2
    bytes_accessed = (x.size * x.dtype.itemsize      # activations in
                      + w1q.size + w2q.size          # int8 weights
                      + vec.size * 4                 # packed per-feature slab
                      + B * 4)                       # output

    operands = (x, w1q, w2q, vec)

    # NOTE: at serving-scale batches (B >= ~256), switch to a grid over B
    # (block of 128-256 rows), keep the weight index_maps constant across the
    # B axis so w1q/w2q are fetched once, and set
    # compiler_params=pltpu.CompilerParams(dimension_semantics=("parallel",))
    # so v7x shards rows across its two TensorCores. At B=8 the single-shot
    # form is faster (a grid only adds ~0.35 us/step of overhead).
    out = pl.pallas_call(
        _mlp_kernel,
        out_shape=jax.ShapeDtypeStruct((B, 1), jnp.float32),
        in_specs=[_full_spec(op.shape) for op in operands],
        out_specs=_full_spec((B, 1)),
        cost_estimate=pl.CostEstimate(
            flops=flops, transcendentals=B, bytes_accessed=bytes_accessed),
    )(*operands)
    return out


def init_params(key, input_dim):
    """Deterministic synthetic parameters matching the module's shapes."""
    ks = jax.random.split(key, 8)

    def lin(kw, kb, fan_in, fan_out):
        w = jax.random.normal(kw, (fan_in, fan_out), jnp.float32) * 0.02
        b = jax.random.normal(kb, (fan_out,), jnp.float32) * 0.01
        return w, b

    w1, b1 = lin(ks[0], ks[1], input_dim, HIDDEN1)
    w2, b2 = lin(ks[2], ks[3], HIDDEN1, HIDDEN2)
    w3, b3 = lin(ks[4], ks[5], HIDDEN2, 1)

    # BatchNorm params: gamma, beta, running_mean, running_var.
    g1 = jnp.ones((HIDDEN1,), jnp.float32)
    beta1 = jnp.zeros((HIDDEN1,), jnp.float32)
    m1 = jax.random.normal(ks[6], (HIDDEN1,), jnp.float32) * 0.1
    v1 = jnp.ones((HIDDEN1,), jnp.float32) * 1.5

    g2 = jnp.ones((HIDDEN2,), jnp.float32)
    beta2 = jnp.zeros((HIDDEN2,), jnp.float32)
    m2 = jax.random.normal(ks[7], (HIDDEN2,), jnp.float32) * 0.1
    v2 = jnp.ones((HIDDEN2,), jnp.float32) * 0.8

    return (w1, b1, g1, beta1, m1, v1,
            w2, b2, g2, beta2, m2, v2,
            w3, b3)


def reference_forward(x, params):
    """Pure-JAX f32 reference (exact module semantics, eval mode)."""
    (w1, b1, g1, beta1, m1, v1,
     w2, b2, g2, beta2, m2, v2,
     w3, b3) = params
    h = x @ w1 + b1
    h = (h - m1) / jnp.sqrt(v1 + BN_EPS) * g1 + beta1
    h = jnp.maximum(h, 0.0)
    h = h @ w2 + b2
    h = (h - m2) / jnp.sqrt(v2 + BN_EPS) * g2 + beta2
    h = jnp.maximum(h, 0.0)
    logits = h @ w3 + b3
    return jax.nn.sigmoid(logits)


if __name__ == "__main__":
    # InceptionV3 pooled embeddings are 2048-dim; keep batch small.
    B, INPUT_DIM = 8, 2048

    key = jax.random.PRNGKey(0)
    k_x, k_p = jax.random.split(key)
    x = jax.random.normal(k_x, (B, INPUT_DIM), jnp.float32)
    params = init_params(k_p, INPUT_DIM)

    # One-time preparation (BN fold + int8 quantization + packing), hoisted
    # out of the per-call forward path.
    w1q, w2q, vec = prepare_params(params)
    w1q, w2q, vec = (jax.block_until_ready(a) for a in (w1q, w2q, vec))

    out = inception_binary_classifier_forward(x, w1q, w2q, vec)
    out = jax.block_until_ready(out)

    ref = reference_forward(x, params)
    assert out.shape == (B, 1)
    # int8 weights + bf16 activations => loosened tolerance vs f32 reference.
    assert jnp.allclose(out, ref, atol=1e-2, rtol=0.0), "mismatch vs reference"

    # TODO(synk): training-mode BatchNorm (batch statistics) and Dropout
    # sampling are not implemented; this kernel reproduces eval-mode forward.
    print("KERNEL_OK")
</pallas_src>

<mosaic_0001>
module attributes {stable_mosaic.version = 11 : i64} {
  func.func @_mlp_kernel(%arg0: memref<8x2048xf32, #tpu.memory_space<vmem>>, %arg1: memref<2048x512xi8, #tpu.memory_space<vmem>>, %arg2: memref<512x256xi8, #tpu.memory_space<vmem>>, %arg3: memref<1x1920xf32, #tpu.memory_space<vmem>>, %arg4: memref<8x1xf32, #tpu.memory_space<vmem>>) attributes {dimension_semantics = [], scalar_prefetch = 0 : i64, scratch_operands = 0 : i64, tpu.core_type = #tpu.core_type<tc>} {
    %c0 = arith.constant 0 : index
    %c0_0 = arith.constant 0 : index
    %0 = vector.load %arg0[%c0, %c0_0] : memref<8x2048xf32, #tpu.memory_space<vmem>>, vector<8x2048xf32>
    %1 = arith.truncf %0 : vector<8x2048xf32> to vector<8x2048xbf16>
    %c0_1 = arith.constant 0 : index
    %c0_2 = arith.constant 0 : index
    %2 = vector.load %arg1[%c0_1, %c0_2] : memref<2048x512xi8, #tpu.memory_space<vmem>>, vector<2048x512xi8>
    %3 = arith.sitofp %2 : vector<2048x512xi8> to vector<2048x512xbf16>
    %cst = arith.constant dense<0.000000e+00> : vector<8x512xf32>
    %4 = tpu.matmul %1, %3, %cst {dimension_numbers = #tpu.dot_dimension_numbers<[1], [0], [0], [1], [0, 0, 1, 1], [], []>} : vector<8x2048xbf16>, vector<2048x512xbf16>, vector<8x512xf32> -> vector<8x512xf32>
    %c0_3 = arith.constant 0 : index
    %c0_4 = arith.constant 0 : index
    %5 = vector.load %arg3[%c0_3, %c0_4] : memref<1x1920xf32, #tpu.memory_space<vmem>>, vector<1x512xf32>
    %6 = vector.broadcast %5 : vector<1x512xf32> to vector<8x512xf32>
    %7 = arith.mulf %4, %6 : vector<8x512xf32>
    %c0_5 = arith.constant 0 : index
    %c512 = arith.constant 512 : index
    %8 = vector.load %arg3[%c0_5, %c512] : memref<1x1920xf32, #tpu.memory_space<vmem>>, vector<1x512xf32>
    %9 = vector.broadcast %8 : vector<1x512xf32> to vector<8x512xf32>
    %10 = arith.addf %7, %9 : vector<8x512xf32>
    %cst_6 = arith.constant 0.000000e+00 : f32
    %11 = vector.broadcast %cst_6 : f32 to vector<8x512xf32>
    %12 = arith.maximumf %10, %11 : vector<8x512xf32>
    %c0_7 = arith.constant 0 : index
    %c0_8 = arith.constant 0 : index
    %13 = vector.load %arg2[%c0_7, %c0_8] : memref<512x256xi8, #tpu.memory_space<vmem>>, vector<512x256xi8>
    %14 = arith.sitofp %13 : vector<512x256xi8> to vector<512x256xbf16>
    %15 = arith.truncf %12 : vector<8x512xf32> to vector<8x512xbf16>
    %cst_9 = arith.constant dense<0.000000e+00> : vector<8x256xf32>
    %16 = tpu.matmul %15, %14, %cst_9 {dimension_numbers = #tpu.dot_dimension_numbers<[1], [0], [0], [1], [0, 0, 1, 1], [], []>} : vector<8x512xbf16>, vector<512x256xbf16>, vector<8x256xf32> -> vector<8x256xf32>
    %c0_10 = arith.constant 0 : index
    %c1024 = arith.constant 1024 : index
    %17 = vector.load %arg3[%c0_10, %c1024] : memref<1x1920xf32, #tpu.memory_space<vmem>>, vector<1x256xf32>
    %18 = vector.broadcast %17 : vector<1x256xf32> to vector<8x256xf32>
    %19 = arith.mulf %16, %18 : vector<8x256xf32>
    %c0_11 = arith.constant 0 : index
    %c1280 = arith.constant 1280 : index
    %20 = vector.load %arg3[%c0_11, %c1280] : memref<1x1920xf32, #tpu.memory_space<vmem>>, vector<1x256xf32>
    %21 = vector.broadcast %20 : vector<1x256xf32> to vector<8x256xf32>
    %22 = arith.addf %19, %21 : vector<8x256xf32>
    %cst_12 = arith.constant 0.000000e+00 : f32
    %23 = vector.broadcast %cst_12 : f32 to vector<8x256xf32>
    %24 = arith.maximumf %22, %23 : vector<8x256xf32>
    %c0_13 = arith.constant 0 : index
    %c1536 = arith.constant 1536 : index
    %25 = vector.load %arg3[%c0_13, %c1536] : memref<1x1920xf32, #tpu.memory_space<vmem>>, vector<1x256xf32>
    %c0_14 = arith.constant 0 : index
    %c1792 = arith.constant 1792 : index
    %26 = vector.load %arg3[%c0_14, %c1792] : memref<1x1920xf32, #tpu.memory_space<vmem>>, vector<1x1xf32>
    %27 = vector.broadcast %25 : vector<1x256xf32> to vector<8x256xf32>
    %28 = arith.mulf %24, %27 : vector<8x256xf32>
    %cst_15 = arith.constant dense<0.000000e+00> : vector<8xf32>
    %29 = vector.multi_reduction <add>, %28, %cst_15 [1] : vector<8x256xf32> to vector<8xf32>
    %30 = vector.shape_cast %29 : vector<8xf32> to vector<8x1xf32>
    %31 = vector.broadcast %26 : vector<1x1xf32> to vector<8x1xf32>
    %32 = arith.addf %30, %31 : vector<8x1xf32>
    %33 = math.absf %32 : vector<8x1xf32>
    %cst_16 = arith.constant 0.000000e+00 : f32
    %34 = vector.broadcast %cst_16 : f32 to vector<8x1xf32>
    %35 = arith.subf %34, %33 : vector<8x1xf32>
    %36 = math.exp %35 : vector<8x1xf32>
    %cst_17 = arith.constant 0.000000e+00 : f32
    %37 = vector.broadcast %cst_17 : f32 to vector<8x1xf32>
    %38 = arith.cmpf oge, %32, %37 : vector<8x1xf32>
    %cst_18 = arith.constant 1.000000e+00 : f32
    %39 = vector.broadcast %cst_18 : f32 to vector<8x1xf32>
    %40 = arith.addf %39, %36 : vector<8x1xf32>
    %cst_19 = arith.constant 1.000000e+00 : f32
    %41 = vector.broadcast %cst_19 : f32 to vector<8x1xf32>
    %42 = arith.divf %41, %40 : vector<8x1xf32>
    %cst_20 = arith.constant 1.000000e+00 : f32
    %43 = vector.broadcast %cst_20 : f32 to vector<8x1xf32>
    %44 = arith.addf %43, %36 : vector<8x1xf32>
    %45 = arith.divf %36, %44 : vector<8x1xf32>
    %46 = arith.select %38, %42, %45 : vector<8x1xi1>, vector<8x1xf32>
    %c0_21 = arith.constant 0 : index
    %c0_22 = arith.constant 0 : index
    %47 = vector.load %arg4[%c0_21, %c0_22] : memref<8x1xf32, #tpu.memory_space<vmem>>, vector<8x1xf32>
    tpu.vector_store %arg4[%c0_21, %c0_22], %46 {strides = array<i32>} : memref<8x1xf32, #tpu.memory_space<vmem>>, vector<8x1xf32>,
    return
  }
}

</mosaic_0001>

<llo_original>
// kernel: inception_binary_classifier_forward.1
$region0: #{inception_binary_classifier_forward.1}
  #allocation0 [shape = 'u32[]', space=smem, size = 0x4, offset = 0x4, fixed_abs, tag = 'smem constant byte address 0x4 - core index']
  #allocation1 [shape = 'u32[144,128]{1,0:T(1,128)}', space=vmem, size = 0x12000, scoped, tag = 'internal scratch']
  %s0 = inlined_call_operand.hbm [shape: f32[8,2048], index: 0, kind: input, shape index: {}]
  %s1 = inlined_call_operand.hbm [shape: s8[2048,512], index: 1, kind: input, shape index: {}]
  %s2 = inlined_call_operand.hbm [shape: s8[512,256], index: 2, kind: input, shape index: {}]
  %s3 = inlined_call_operand.hbm [shape: f32[1,1920], index: 3, kind: input, shape index: {}]
  %s4 = inlined_call_operand.vmem [shape: f32[8,1], index: 4, kind: output, shape index: {}]
  %s5 = sld [smem:[#allocation0]]
  $region42: #{inception_binary_classifier_forward.1} parent=0
    _
  %s7 = ssub.s32 1, %s5
  %s8 = scalar_select 0, %s7, %s5
  $region1: #{inception_binary_classifier_forward.1} parent=0
    #allocation2 [shape = 'u8[65536]{0}', space=vmem, size = 0x10000, scoped, tag = 'input window, operand 0, single buffered']
    #allocation3 [shape = 's32[1]{0}', space=sflag, size = 0x4, scoped, tag = 'scoped memory for inception_binary_classifier_forward.1']
    #allocation4 [shape = 'u8[1048576]{0}', space=vmem, size = 0x100000, scoped, tag = 'input window, operand 1, single buffered']
    #allocation5 [shape = 's32[1]{0}', space=sflag, size = 0x4, scoped, tag = 'scoped memory for inception_binary_classifier_forward.1']
    #allocation6 [shape = 'u8[131072]{0}', space=vmem, size = 0x20000, scoped, tag = 'input window, operand 2, single buffered']
    #allocation7 [shape = 'u8[7680]{0}', space=vmem, size = 0x2000, scoped, tag = 'input window, operand 3, single buffered']
    #allocation8 [shape = 's32[1]{0}', space=sflag, size = 0x4, scoped, tag = 'scoped memory for inception_binary_classifier_forward.1']
    %9 = vsyncpa [#allocation3], 0
    %10 = vsyncpa [#allocation5], 0
    %11 = vsyncpa [#allocation8], 0
    // Predicated region
    $region2: #{inception_binary_classifier_forward.1} parent=1 // pred_check
      _
    $region3: #{inception_binary_classifier_forward.1} parent=1 // pred_check_branch
      %13 = sbr.rel (0) target = $region5
    $region4: #{inception_binary_classifier_forward.1} parent=1 // pred_region
      %s15 = ssub.s32 2048, 2048
      %16 = vsyncadd [#allocation3], %s15
      %s18 = sshll.u32 [#allocation2], 4
      %s19 = int_to_ptr.vmem [resolvable:$true] %s18
      %21 = dma.hbm_to_vmem [thread:$0]  %s0, 2048, %s19, [#allocation3]
    $region5: #{inception_binary_classifier_forward.1} parent=1 // pred_fallthru
      _
    // Predicated region
    $region6: #{inception_binary_classifier_forward.1} parent=1 // pred_check
      _
    $region7: #{inception_binary_classifier_forward.1} parent=1 // pred_check_branch
      %23 = sbr.rel (0) target = $region9
    $region8: #{inception_binary_classifier_forward.1} parent=1 // pred_region
      %s25 = ssub.s32 32768, 32768
      %26 = vsyncadd [#allocation5], %s25
      %s27 = sshll.u32 [#allocation4], 4
      %s28 = int_to_ptr.vmem [resolvable:$true] %s27
      %33 = dma.hbm_to_vmem [thread:$0]  %s1, 32768, %s28, [#allocation5], 512, 512, 32
    $region9: #{inception_binary_classifier_forward.1} parent=1 // pred_fallthru
      _
    // Predicated region
    $region10: #{inception_binary_classifier_forward.1} parent=1 // pred_check
      _
    $region11: #{inception_binary_classifier_forward.1} parent=1 // pred_check_branch
      %35 = sbr.rel (0) target = $region13
    $region12: #{inception_binary_classifier_forward.1} parent=1 // pred_region
      %s37 = ssub.s32 4096, 4096
      %38 = vsyncadd [#allocation5], %s37
      %s39 = sshll.u32 [#allocation6], 4
      %s40 = int_to_ptr.vmem [resolvable:$true] %s39
      %45 = dma.hbm_to_vmem [thread:$0]  %s2, 4096, %s40, [#allocation5], 256, 256, 16
    $region13: #{inception_binary_classifier_forward.1} parent=1 // pred_fallthru
      _
    // Predicated region
    $region14: #{inception_binary_classifier_forward.1} parent=1 // pred_check
      _
    $region15: #{inception_binary_classifier_forward.1} parent=1 // pred_check_branch
      %47 = sbr.rel (0) target = $region17
    $region16: #{inception_binary_classifier_forward.1} parent=1 // pred_region
      %s49 = ssub.s32 240, 240
      %50 = vsyncadd [#allocation8], %s49
      %s52 = sshll.u32 [#allocation7], 4
      %s53 = int_to_ptr.vmem [resolvable:$true] %s52
      %55 = dma.hbm_to_vmem [thread:$0]  %s3, 240, %s53, [#allocation8]
    $region17: #{inception_binary_classifier_forward.1} parent=1 // pred_fallthru
      _
    // Predicated region
    $region18: #{inception_binary_classifier_forward.1} parent=1 // pred_check
      _
    $region19: #{inception_binary_classifier_forward.1} parent=1 // pred_check_branch
      %57 = sbr.rel (0) target = $region21
    $region20: #{inception_binary_classifier_forward.1} parent=1 // pred_region
      %58 = dma.done [#allocation3], 2048
    $region21: #{inception_binary_classifier_forward.1} parent=1 // pred_fallthru
      _
    // Predicated region
    $region22: #{inception_binary_classifier_forward.1} parent=1 // pred_check
      _
    $region23: #{inception_binary_classifier_forward.1} parent=1 // pred_check_branch
      %60 = sbr.rel (0) target = $region25
    $region24: #{inception_binary_classifier_forward.1} parent=1 // pred_region
      %61 = dma.done [#allocation5], 32768
    $region25: #{inception_binary_classifier_forward.1} parent=1 // pred_fallthru
      _
    // Predicated region
    $region26: #{inception_binary_classifier_forward.1} parent=1 // pred_check
      _
    $region27: #{inception_binary_classifier_forward.1} parent=1 // pred_check_branch
      %63 = sbr.rel (0) target = $region29
    $region28: #{inception_binary_classifier_forward.1} parent=1 // pred_region
      %64 = dma.done [#allocation5], 4096
    $region29: #{inception_binary_classifier_forward.1} parent=1 // pred_fallthru
      _
    // Predicated region
    $region30: #{inception_binary_classifier_forward.1} parent=1 // pred_check
      _
    $region31: #{inception_binary_classifier_forward.1} parent=1 // pred_check_branch
      %66 = sbr.rel (0) target = $region33
    $region32: #{inception_binary_classifier_forward.1} parent=1 // pred_region
      %67 = dma.done [#allocation8], 240
    $region33: #{inception_binary_classifier_forward.1} parent=1 // pred_fallthru
      _
    %v68 = vld [vmem:[#allocation2] sm:$0xff]
    %v69 = vld [vmem:[#allocation2 + $0x8] sm:$0xff]
    %v70 = vld [vmem:[#allocation2 + $0x10] sm:$0xff]
    %v71 = vld [vmem:[#allocation2 + $0x18] sm:$0xff]
    %v72 = vld [vmem:[#allocation2 + $0x20] sm:$0xff]
    %v73 = vld [vmem:[#allocation2 + $0x28] sm:$0xff]
    %v74 = vld [vmem:[#allocation2 + $0x30] sm:$0xff]
    %v75 = vld [vmem:[#allocation2 + $0x38] sm:$0xff]
    %v76 = vld [vmem:[#allocation2 + $0x40] sm:$0xff]
    %v77 = vld [vmem:[#allocation2 + $0x48] sm:$0xff]
    %v78 = vld [vmem:[#allocation2 + $0x50] sm:$0xff]
    %v79 = vld [vmem:[#allocation2 + $0x58] sm:$0xff]
    %v80 = vld [vmem:[#allocation2 + $0x60] sm:$0xff]
    %v81 = vld [vmem:[#allocation2 + $0x68] sm:$0xff]
    %v82 = vld [vmem:[#allocation2 + $0x70] sm:$0xff]
    %v83 = vld [vmem:[#allocation2 + $0x78] sm:$0xff]
    %v84 = vpack.c.bf16 %v68, %v68
    %v85 = vpack.c.bf16 %v69, %v69
    %v86 = vpack.c.bf16 %v70, %v70
    %v87 = vpack.c.bf16 %v71, %v71
    %v88 = vpack.c.bf16 %v72, %v72
    %v89 = vpack.c.bf16 %v73, %v73
    %v90 = vpack.c.bf16 %v74, %v74
    %v91 = vpack.c.bf16 %v75, %v75
    %v92 = vpack.c.bf16 %v76, %v76
    %v93 = vpack.c.bf16 %v77, %v77
    %v94 = vpack.c.bf16 %v78, %v78
    %v95 = vpack.c.bf16 %v79, %v79
    %v96 = vpack.c.bf16 %v80, %v80
    %v97 = vpack.c.bf16 %v81, %v81
    %v98 = vpack.c.bf16 %v82, %v82
    %v99 = vpack.c.bf16 %v83, %v83
    %v100 = vld [vmem:[#allocation4] sm:$0xff]
    %v101 = vld [vmem:[#allocation4 + $0x8] sm:$0xff]
    %v102 = vld [vmem:[#allocation4 + $0x10] sm:$0xff]
    %v103 = vld [vmem:[#allocation4 + $0x18] sm:$0xff]
    %v104 = vld [vmem:[#allocation4 + $0x20] sm:$0xff]
    %v105 = vld [vmem:[#allocation4 + $0x28] sm:$0xff]
    %v106 = vld [vmem:[#allocation4 + $0x30] sm:$0xff]
    %v107 = vld [vmem:[#allocation4 + $0x38] sm:$0xff]
    %v108 = vld [vmem:[#allocation4 + $0x40] sm:$0xff]
    %v109 = vld [vmem:[#allocation4 + $0x48] sm:$0xff]
    %v110 = vld [vmem:[#allocation4 + $0x50] sm:$0xff]
    %v111 = vld [vmem:[#allocation4 + $0x58] sm:$0xff]
    %v112 = vld [vmem:[#allocation4 + $0x60] sm:$0xff]
    %v113 = vld [vmem:[#allocation4 + $0x68] sm:$0xff]
    %v114 = vld [vmem:[#allocation4 + $0x70] sm:$0xff]
    %v115 = vld [vmem:[#allocation4 + $0x78] sm:$0xff]
    %v116 = vld [vmem:[#allocation4 + $0x80] sm:$0xff]
    %v117 = vld [vmem:[#allocation4 + $0x88] sm:$0xff]
    %v118 = vld [vmem:[#allocation4 + $0x90] sm:$0xff]
    %v119 = vld [vmem:[#allocation4 + $0x98] sm:$0xff]
    %v120 = vld [vmem:[#allocation4 + $0xa0] sm:$0xff]
    %v121 = vld [vmem:[#allocation4 + $0xa8] sm:$0xff]
    %v122 = vld [vmem:[#allocation4 + $0xb0] sm:$0xff]
    %v123 = vld [vmem:[#allocation4 + $0xb8] sm:$0xff]
    %v124 = vld [vmem:[#allocation4 + $0xc0] sm:$0xff]
    %v125 = vld [vmem:[#allocation4 + $0xc8] sm:$0xff]
    %v126 = vld [vmem:[#allocation4 + $0xd0] sm:$0xff]
    %v127 = vld [vmem:[#allocation4 + $0xd8] sm:$0xff]
    %v128 = vld [vmem:[#allocation4 + $0xe0] sm:$0xff]
    %v129 = vld [vmem:[#allocation4 + $0xe8] sm:$0xff]
    %v130 = vld [vmem:[#allocation4 + $0xf0] sm:$0xff]
    %v131 = vld [vmem:[#allocation4 + $0xf8] sm:$0xff]
    %v132 = vld [vmem:[#allocation4 + $0x100] sm:$0xff]
    %v133 = vld [vmem:[#allocation4 + $0x108] sm:$0xff]
    %v134 = vld [vmem:[#allocation4 + $0x110] sm:$0xff]
    %v135 = vld [vmem:[#allocation4 + $0x118] sm:$0xff]
    %v136 = vld [vmem:[#allocation4 + $0x120] sm:$0xff]
    %v137 = vld [vmem:[#allocation4 + $0x128] sm:$0xff]
    %v138 = vld [vmem:[#allocation4 + $0x130] sm:$0xff]
    %v139 = vld [vmem:[#allocation4 + $0x138] sm:$0xff]
    %v140 = vld [vmem:[#allocation4 + $0x140] sm:$0xff]
    %v141 = vld [vmem:[#allocation4 + $0x148] sm:$0xff]
    %v142 = vld [vmem:[#allocation4 + $0x150] sm:$0xff]
    %v143 = vld [vmem:[#allocation4 + $0x158] sm:$0xff]
    %v144 = vld [vmem:[#allocation4 + $0x160] sm:$0xff]
    %v145 = vld [vmem:[#allocation4 + $0x168] sm:$0xff]
    %v146 = vld [vmem:[#allocation4 + $0x170] sm:$0xff]
    %v147 = vld [vmem:[#allocation4 + $0x178] sm:$0xff]
    %v148 = vld [vmem:[#allocation4 + $0x180] sm:$0xff]
    %v149 = vld [vmem:[#allocation4 + $0x188] sm:$0xff]
    %v150 = vld [vmem:[#allocation4 + $0x190] sm:$0xff]
    %v151 = vld [vmem:[#allocation4 + $0x198] sm:$0xff]
    %v152 = vld [vmem:[#allocation4 + $0x1a0] sm:$0xff]
    %v153 = vld [vmem:[#allocation4 + $0x1a8] sm:$0xff]
    %v154 = vld [vmem:[#allocation4 + $0x1b0] sm:$0xff]
    %v155 = vld [vmem:[#allocation4 + $0x1b8] sm:$0xff]
    %v156 = vld [vmem:[#allocation4 + $0x1c0] sm:$0xff]
    %v157 = vld [vmem:[#allocation4 + $0x1c8] sm:$0xff]
    %v158 = vld [vmem:[#allocation4 + $0x1d0] sm:$0xff]
    %v159 = vld [vmem:[#allocation4 + $0x1d8] sm:$0xff]
    %v160 = vld [vmem:[#allocation4 + $0x1e0] sm:$0xff]
    %v161 = vld [vmem:[#allocation4 + $0x1e8] sm:$0xff]
    %v162 = vld [vmem:[#allocation4 + $0x1f0] sm:$0xff]
    %v163 = vld [vmem:[#allocation4 + $0x1f8] sm:$0xff]
    %v164 = vld [vmem:[#allocation4 + $0x200] sm:$0xff]
    %v165 = vld [vmem:[#allocation4 + $0x208] sm:$0xff]
    %v166 = vld [vmem:[#allocation4 + $0x210] sm:$0xff]
    %v167 = vld [vmem:[#allocation4 + $0x218] sm:$0xff]
    %v168 = vld [vmem:[#allocation4 + $0x220] sm:$0xff]
    %v169 = vld [vmem:[#allocation4 + $0x228] sm:$0xff]
    %v170 = vld [vmem:[#allocation4 + $0x230] sm:$0xff]
    %v171 = vld [vmem:[#allocation4 + $0x238] sm:$0xff]
    %v172 = vld [vmem:[#allocation4 + $0x240] sm:$0xff]
    %v173 = vld [vmem:[#allocation4 + $0x248] sm:$0xff]
    %v174 = vld [vmem:[#allocation4 + $0x250] sm:$0xff]
    %v175 = vld [vmem:[#allocation4 + $0x258] sm:$0xff]
    %v176 = vld [vmem:[#allocation4 + $0x260] sm:$0xff]
    %v177 = vld [vmem:[#allocation4 + $0x268] sm:$0xff]
    %v178 = vld [vmem:[#allocation4 + $0x270] sm:$0xff]
    %v179 = vld [vmem:[#allocation4 + $0x278] sm:$0xff]
    %v180 = vld [vmem:[#allocation4 + $0x280] sm:$0xff]
    %v181 = vld [vmem:[#allocation4 + $0x288] sm:$0xff]
    %v182 = vld [vmem:[#allocation4 + $0x290] sm:$0xff]
    %v183 = vld [vmem:[#allocation4 + $0x298] sm:$0xff]
    %v184 = vld [vmem:[#allocation4 + $0x2a0] sm:$0xff]
    %v185 = vld [vmem:[#allocation4 + $0x2a8] sm:$0xff]
    %v186 = vld [vmem:[#allocation4 + $0x2b0] sm:$0xff]
    %v187 = vld [vmem:[#allocation4 + $0x2b8] sm:$0xff]
    %v188 = vld [vmem:[#allocation4 + $0x2c0] sm:$0xff]
    %v189 = vld [vmem:[#allocation4 + $0x2c8] sm:$0xff]
    %v190 = vld [vmem:[#allocation4 + $0x2d0] sm:$0xff]
    %v191 = vld [vmem:[#allocation4 + $0x2d8] sm:$0xff]
    %v192 = vld [vmem:[#allocation4 + $0x2e0] sm:$0xff]
    %v193 = vld [vmem:[#allocation4 + $0x2e8] sm:$0xff]
    %v194 = vld [vmem:[#allocation4 + $0x2f0] sm:$0xff]
    %v195 = vld [vmem:[#allocation4 + $0x2f8] sm:$0xff]
    %v196 = vld [vmem:[#allocation4 + $0x300] sm:$0xff]
    %v197 = vld [vmem:[#allocation4 + $0x308] sm:$0xff]
    %v198 = vld [vmem:[#allocation4 + $0x310] sm:$0xff]
    %v199 = vld [vmem:[#allocation4 + $0x318] sm:$0xff]
    %v200 = vld [vmem:[#allocation4 + $0x320] sm:$0xff]
    %v201 = vld [vmem:[#allocation4 + $0x328] sm:$0xff]
    %v202 = vld [vmem:[#allocation4 + $0x330] sm:$0xff]
    %v203 = vld [vmem:[#allocation4 + $0x338] sm:$0xff]
    %v204 = vld [vmem:[#allocation4 + $0x340] sm:$0xff]
    %v205 = vld [vmem:[#allocation4 + $0x348] sm:$0xff]
    %v206 = vld [vmem:[#allocation4 + $0x350] sm:$0xff]
    %v207 = vld [vmem:[#allocation4 + $0x358] sm:$0xff]
    %v208 = vld [vmem:[#allocation4 + $0x360] sm:$0xff]
    %v209 = vld [vmem:[#allocation4 + $0x368] sm:$0xff]
    %v210 = vld [vmem:[#allocation4 + $0x370] sm:$0xff]
    %v211 = vld [vmem:[#allocation4 + $0x378] sm:$0xff]
    %v212 = vld [vmem:[#allocation4 + $0x380] sm:$0xff]
    %v213 = vld [vmem:[#allocation4 + $0x388] sm:$0xff]
    %v214 = vld [vmem:[#allocation4 + $0x390] sm:$0xff]
    %v215 = vld [vmem:[#allocation4 + $0x398] sm:$0xff]
    %v216 = vld [vmem:[#allocation4 + $0x3a0] sm:$0xff]
    %v217 = vld [vmem:[#allocation4 + $0x3a8] sm:$0xff]
    %v218 = vld [vmem:[#allocation4 + $0x3b0] sm:$0xff]
    %v219 = vld [vmem:[#allocation4 + $0x3b8] sm:$0xff]
    %v220 = vld [vmem:[#allocation4 + $0x3c0] sm:$0xff]
    %v221 = vld [vmem:[#allocation4 + $0x3c8] sm:$0xff]
    %v222 = vld [vmem:[#allocation4 + $0x3d0] sm:$0xff]
    %v223 = vld [vmem:[#allocation4 + $0x3d8] sm:$0xff]
    %v224 = vld [vmem:[#allocation4 + $0x3e0] sm:$0xff]
    %v225 = vld [vmem:[#allocation4 + $0x3e8] sm:$0xff]
    %v226 = vld [vmem:[#allocation4 + $0x3f0] sm:$0xff]
    %v227 = vld [vmem:[#allocation4 + $0x3f8] sm:$0xff]
    %v228 = vld [vmem:[#allocation4 + $0x400] sm:$0xff]
    %v229 = vld [vmem:[#allocation4 + $0x408] sm:$0xff]
    %v230 = vld [vmem:[#allocation4 + $0x410] sm:$0xff]
    %v231 = vld [vmem:[#allocation4 + $0x418] sm:$0xff]
    %v232 = vld [vmem:[#allocation4 + $0x420] sm:$0xff]
    %v233 = vld [vmem:[#allocation4 + $0x428] sm:$0xff]
    %v234 = vld [vmem:[#allocation4 + $0x430] sm:$0xff]
    %v235 = vld [vmem:[#allocation4 + $0x438] sm:$0xff]
    %v236 = vld [vmem:[#allocation4 + $0x440] sm:$0xff]
    %v237 = vld [vmem:[#allocation4 + $0x448] sm:$0xff]
    %v238 = vld [vmem:[#allocation4 + $0x450] sm:$0xff]
    %v239 = vld [vmem:[#allocation4 + $0x458] sm:$0xff]
    %v240 = vld [vmem:[#allocation4 + $0x460] sm:$0xff]
    %v241 = vld [vmem:[#allocation4 + $0x468] sm:$0xff]
    %v242 = vld [vmem:[#allocation4 + $0x470] sm:$0xff]
    %v243 = vld [vmem:[#allocation4 + $0x478] sm:$0xff]
    %v244 = vld [vmem:[#allocation4 + $0x480] sm:$0xff]
    %v245 = vld [vmem:[#allocation4 + $0x488] sm:$0xff]
    %v246 = vld [vmem:[#allocation4 + $0x490] sm:$0xff]
    %v247 = vld [vmem:[#allocation4 + $0x498] sm:$0xff]
    %v248 = vld [vmem:[#allocation4 + $0x4a0] sm:$0xff]
    %v249 = vld [vmem:[#allocation4 + $0x4a8] sm:$0xff]
    %v250 = vld [vmem:[#allocation4 + $0x4b0] sm:$0xff]
    %v251 = vld [vmem:[#allocation4 + $0x4b8] sm:$0xff]
    %v252 = vld [vmem:[#allocation4 + $0x4c0] sm:$0xff]
    %v253 = vld [vmem:[#allocation4 + $0x4c8] sm:$0xff]
    %v254 = vld [vmem:[#allocation4 + $0x4d0] sm:$0xff]
    %v255 = vld [vmem:[#allocation4 + $0x4d8] sm:$0xff]
    %v256 = vld [vmem:[#allocation4 + $0x4e0] sm:$0xff]
    %v257 = vld [vmem:[#allocation4 + $0x4e8] sm:$0xff]
    %v258 = vld [vmem:[#allocation4 + $0x4f0] sm:$0xff]
    %v259 = vld [vmem:[#allocation4 + $0x4f8] sm:$0xff]
    %v260 = vld [vmem:[#allocation4 + $0x500] sm:$0xff]
    %v261 = vld [vmem:[#allocation4 + $0x508] sm:$0xff]
    %v262 = vld [vmem:[#allocation4 + $0x510] sm:$0xff]
    %v263 = vld [vmem:[#allocation4 + $0x518] sm:$0xff]
    %v264 = vld [vmem:[#allocation4 + $0x520] sm:$0xff]
    %v265 = vld [vmem:[#allocation4 + $0x528] sm:$0xff]
    %v266 = vld [vmem:[#allocation4 + $0x530] sm:$0xff]
    %v267 = vld [vmem:[#allocation4 + $0x538] sm:$0xff]
    %v268 = vld [vmem:[#allocation4 + $0x540] sm:$0xff]
    %v269 = vld [vmem:[#allocation4 + $0x548] sm:$0xff]
    %v270 = vld [vmem:[#allocation4 + $0x550] sm:$0xff]
    %v271 = vld [vmem:[#allocation4 + $0x558] sm:$0xff]
    %v272 = vld [vmem:[#allocation4 + $0x560] sm:$0xff]
    %v273 = vld [vmem:[#allocation4 + $0x568] sm:$0xff]
    %v274 = vld [vmem:[#allocation4 + $0x570] sm:$0xff]
    %v275 = vld [vmem:[#allocation4 + $0x578] sm:$0xff]
    %v276 = vld [vmem:[#allocation4 + $0x580] sm:$0xff]
    %v277 = vld [vmem:[#allocation4 + $0x588] sm:$0xff]
    %v278 = vld [vmem:[#allocation4 + $0x590] sm:$0xff]
    %v279 = vld [vmem:[#allocation4 + $0x598] sm:$0xff]
    %v280 = vld [vmem:[#allocation4 + $0x5a0] sm:$0xff]
    %v281 = vld [vmem:[#allocation4 + $0x5a8] sm:$0xff]
    %v282 = vld [vmem:[#allocation4 + $0x5b0] sm:$0xff]
    %v283 = vld [vmem:[#allocation4 + $0x5b8] sm:$0xff]
    %v284 = vld [vmem:[#allocation4 + $0x5c0] sm:$0xff]
    %v285 = vld [vmem:[#allocation4 + $0x5c8] sm:$0xff]
    %v286 = vld [vmem:[#allocation4 + $0x5d0] sm:$0xff]
    %v287 = vld [vmem:[#allocation4 + $0x5d8] sm:$0xff]
    %v288 = vld [vmem:[#allocation4 + $0x5e0] sm:$0xff]
    %v289 = vld [vmem:[#allocation4 + $0x5e8] sm:$0xff]
    %v290 = vld [vmem:[#allocation4 + $0x5f0] sm:$0xff]
    %v291 = vld [vmem:[#allocation4 + $0x5f8] sm:$0xff]
    %v292 = vld [vmem:[#allocation4 + $0x600] sm:$0xff]
    %v293 = vld [vmem:[#allocation4 + $0x608] sm:$0xff]
    %v294 = vld [vmem:[#allocation4 + $0x610] sm:$0xff]
    %v295 = vld [vmem:[#allocation4 + $0x618] sm:$0xff]
    %v296 = vld [vmem:[#allocation4 + $0x620] sm:$0xff]
    %v297 = vld [vmem:[#allocation4 + $0x628] sm:$0xff]
    %v298 = vld [vmem:[#allocation4 + $0x630] sm:$0xff]
    %v299 = vld [vmem:[#allocation4 + $0x638] sm:$0xff]
    %v300 = vld [vmem:[#allocation4 + $0x640] sm:$0xff]
    %v301 = vld [vmem:[#allocation4 + $0x648] sm:$0xff]
    %v302 = vld [vmem:[#allocation4 + $0x650] sm:$0xff]
    %v303 = vld [vmem:[#allocation4 + $0x658] sm:$0xff]
    %v304 = vld [vmem:[#allocation4 + $0x660] sm:$0xff]
    %v305 = vld [vmem:[#allocation4 + $0x668] sm:$0xff]
    %v306 = vld [vmem:[#allocation4 + $0x670] sm:$0xff]
    %v307 = vld [vmem:[#allocation4 + $0x678] sm:$0xff]
    %v308 = vld [vmem:[#allocation4 + $0x680] sm:$0xff]
    %v309 = vld [vmem:[#allocation4 + $0x688] sm:$0xff]
    %v310 = vld [vmem:[#allocation4 + $0x690] sm:$0xff]
    %v311 = vld [vmem:[#allocation4 + $0x698] sm:$0xff]
    %v312 = vld [vmem:[#allocation4 + $0x6a0] sm:$0xff]
    %v313 = vld [vmem:[#allocation4 + $0x6a8] sm:$0xff]
    %v314 = vld [vmem:[#allocation4 + $0x6b0] sm:$0xff]
    %v315 = vld [vmem:[#allocation4 + $0x6b8] sm:$0xff]
    %v316 = vld [vmem:[#allocation4 + $0x6c0] sm:$0xff]
    %v317 = vld [vmem:[#allocation4 + $0x6c8] sm:$0xff]
    %v318 = vld [vmem:[#allocation4 + $0x6d0] sm:$0xff]
    %v319 = vld [vmem:[#allocation4 + $0x6d8] sm:$0xff]
    %v320 = vld [vmem:[#allocation4 + $0x6e0] sm:$0xff]
    %v321 = vld [vmem:[#allocation4 + $0x6e8] sm:$0xff]
    %v322 = vld [vmem:[#allocation4 + $0x6f0] sm:$0xff]
    %v323 = vld [vmem:[#allocation4 + $0x6f8] sm:$0xff]
    %v324 = vld [vmem:[#allocation4 + $0x700] sm:$0xff]
    %v325 = vld [vmem:[#allocation4 + $0x708] sm:$0xff]
    %v326 = vld [vmem:[#allocation4 + $0x710] sm:$0xff]
    %v327 = vld [vmem:[#allocation4 + $0x718] sm:$0xff]
    %v328 = vld [vmem:[#allocation4 + $0x720] sm:$0xff]
    %v329 = vld [vmem:[#allocation4 + $0x728] sm:$0xff]
    %v330 = vld [vmem:[#allocation4 + $0x730] sm:$0xff]
    %v331 = vld [vmem:[#allocation4 + $0x738] sm:$0xff]
    %v332 = vld [vmem:[#allocation4 + $0x740] sm:$0xff]
    %v333 = vld [vmem:[#allocation4 + $0x748] sm:$0xff]
    %v334 = vld [vmem:[#allocation4 + $0x750] sm:$0xff]
    %v335 = vld [vmem:[#allocation4 + $0x758] sm:$0xff]
    %v336 = vld [vmem:[#allocation4 + $0x760] sm:$0xff]
    %v337 = vld [vmem:[#allocation4 + $0x768] sm:$0xff]
    %v338 = vld [vmem:[#allocation4 + $0x770] sm:$0xff]
    %v339 = vld [vmem:[#allocation4 + $0x778] sm:$0xff]
    %v340 = vld [vmem:[#allocation4 + $0x780] sm:$0xff]
    %v341 = vld [vmem:[#allocation4 + $0x788] sm:$0xff]
    %v342 = vld [vmem:[#allocation4 + $0x790] sm:$0xff]
    %v343 = vld [vmem:[#allocation4 + $0x798] sm:$0xff]
    %v344 = vld [vmem:[#allocation4 + $0x7a0] sm:$0xff]
    %v345 = vld [vmem:[#allocation4 + $0x7a8] sm:$0xff]
    %v346 = vld [vmem:[#allocation4 + $0x7b0] sm:$0xff]
    %v347 = vld [vmem:[#allocation4 + $0x7b8] sm:$0xff]
    %v348 = vld [vmem:[#allocation4 + $0x7c0] sm:$0xff]
    %v349 = vld [vmem:[#allocation4 + $0x7c8] sm:$0xff]
    %v350 = vld [vmem:[#allocation4 + $0x7d0] sm:$0xff]
    %v351 = vld [vmem:[#allocation4 + $0x7d8] sm:$0xff]
    %v352 = vld [vmem:[#allocation4 + $0x7e0] sm:$0xff]
    %v353 = vld [vmem:[#allocation4 + $0x7e8] sm:$0xff]
    %v354 = vld [vmem:[#allocation4 + $0x7f0] sm:$0xff]
    %v355 = vld [vmem:[#allocation4 + $0x7f8] sm:$0xff]
    %v356 = vunpack.c.l.s8.bf16 %v100
    %v357 = vunpack.c.l.s8.bf16 %v101
    %v358 = vunpack.c.l.s8.bf16 %v102
    %v359 = vunpack.c.l.s8.bf16 %v103
    %v360 = vunpack.c.h.s8.bf16 %v100
    %v361 = vunpack.c.h.s8.bf16 %v101
    %v362 = vunpack.c.h.s8.bf16 %v102
    %v363 = vunpack.c.h.s8.bf16 %v103
    %v364 = vunpack.c.l.s8.bf16 %v104
    %v365 = vunpack.c.l.s8.bf16 %v105
    %v366 = vunpack.c.l.s8.bf16 %v106
    %v367 = vunpack.c.l.s8.bf16 %v107
    %v368 = vunpack.c.h.s8.bf16 %v104
    %v369 = vunpack.c.h.s8.bf16 %v105
    %v370 = vunpack.c.h.s8.bf16 %v106
    %v371 = vunpack.c.h.s8.bf16 %v107
    %v372 = vunpack.c.l.s8.bf16 %v108
    %v373 = vunpack.c.l.s8.bf16 %v109
    %v374 = vunpack.c.l.s8.bf16 %v110
    %v375 = vunpack.c.l.s8.bf16 %v111
    %v376 = vunpack.c.h.s8.bf16 %v108
    %v377 = vunpack.c.h.s8.bf16 %v109
    %v378 = vunpack.c.h.s8.bf16 %v110
    %v379 = vunpack.c.h.s8.bf16 %v111
    %v380 = vunpack.c.l.s8.bf16 %v112
    %v381 = vunpack.c.l.s8.bf16 %v113
    %v382 = vunpack.c.l.s8.bf16 %v114
    %v383 = vunpack.c.l.s8.bf16 %v115
    %v384 = vunpack.c.h.s8.bf16 %v112
    %v385 = vunpack.c.h.s8.bf16 %v113
    %v386 = vunpack.c.h.s8.bf16 %v114
    %v387 = vunpack.c.h.s8.bf16 %v115
    %v388 = vunpack.c.l.s8.bf16 %v116
    %v389 = vunpack.c.l.s8.bf16 %v117
    %v390 = vunpack.c.l.s8.bf16 %v118
    %v391 = vunpack.c.l.s8.bf16 %v119
    %v392 = vunpack.c.h.s8.bf16 %v116
    %v393 = vunpack.c.h.s8.bf16 %v117
    %v394 = vunpack.c.h.s8.bf16 %v118
    %v395 = vunpack.c.h.s8.bf16 %v119
    %v396 = vunpack.c.l.s8.bf16 %v120
    %v397 = vunpack.c.l.s8.bf16 %v121
    %v398 = vunpack.c.l.s8.bf16 %v122
    %v399 = vunpack.c.l.s8.bf16 %v123
    %v400 = vunpack.c.h.s8.bf16 %v120
    %v401 = vunpack.c.h.s8.bf16 %v121
    %v402 = vunpack.c.h.s8.bf16 %v122
    %v403 = vunpack.c.h.s8.bf16 %v123
    %v404 = vunpack.c.l.s8.bf16 %v124
    %v405 = vunpack.c.l.s8.bf16 %v125
    %v406 = vunpack.c.l.s8.bf16 %v126
    %v407 = vunpack.c.l.s8.bf16 %v127
    %v408 = vunpack.c.h.s8.bf16 %v124
    %v409 = vunpack.c.h.s8.bf16 %v125
    %v410 = vunpack.c.h.s8.bf16 %v126
    %v411 = vunpack.c.h.s8.bf16 %v127
    %v412 = vunpack.c.l.s8.bf16 %v128
    %v413 = vunpack.c.l.s8.bf16 %v129
    %v414 = vunpack.c.l.s8.bf16 %v130
    %v415 = vunpack.c.l.s8.bf16 %v131
    %v416 = vunpack.c.h.s8.bf16 %v128
    %v417 = vunpack.c.h.s8.bf16 %v129
    %v418 = vunpack.c.h.s8.bf16 %v130
    %v419 = vunpack.c.h.s8.bf16 %v131
    %v420 = vunpack.c.l.s8.bf16 %v132
    %v421 = vunpack.c.l.s8.bf16 %v133
    %v422 = vunpack.c.l.s8.bf16 %v134
    %v423 = vunpack.c.l.s8.bf16 %v135
    %v424 = vunpack.c.h.s8.bf16 %v132
    %v425 = vunpack.c.h.s8.bf16 %v133
    %v426 = vunpack.c.h.s8.bf16 %v134
    %v427 = vunpack.c.h.s8.bf16 %v135
    %v428 = vunpack.c.l.s8.bf16 %v136
    %v429 = vunpack.c.l.s8.bf16 %v137
    %v430 = vunpack.c.l.s8.bf16 %v138
    %v431 = vunpack.c.l.s8.bf16 %v139
    %v432 = vunpack.c.h.s8.bf16 %v136
    %v433 = vunpack.c.h.s8.bf16 %v137
    %v434 = vunpack.c.h.s8.bf16 %v138
    %v435 = vunpack.c.h.s8.bf16 %v139
    %v436 = vunpack.c.l.s8.bf16 %v140
    %v437 = vunpack.c.l.s8.bf16 %v141
    %v438 = vunpack.c.l.s8.bf16 %v142
    %v439 = vunpack.c.l.s8.bf16 %v143
    %v440 = vunpack.c.h.s8.bf16 %v140
    %v441 = vunpack.c.h.s8.bf16 %v141
    %v442 = vunpack.c.h.s8.bf16 %v142
    %v443 = vunpack.c.h.s8.bf16 %v143
    %v444 = vunpack.c.l.s8.bf16 %v144
    %v445 = vunpack.c.l.s8.bf16 %v145
    %v446 = vunpack.c.l.s8.bf16 %v146
    %v447 = vunpack.c.l.s8.bf16 %v147
    %v448 = vunpack.c.h.s8.bf16 %v144
    %v449 = vunpack.c.h.s8.bf16 %v145
    %v450 = vunpack.c.h.s8.bf16 %v146
    %v451 = vunpack.c.h.s8.bf16 %v147
    %v452 = vunpack.c.l.s8.bf16 %v148
    %v453 = vunpack.c.l.s8.bf16 %v149
    %v454 = vunpack.c.l.s8.bf16 %v150
    %v455 = vunpack.c.l.s8.bf16 %v151
    %v456 = vunpack.c.h.s8.bf16 %v148
    %v457 = vunpack.c.h.s8.bf16 %v149
    %v458 = vunpack.c.h.s8.bf16 %v150
    %v459 = vunpack.c.h.s8.bf16 %v151
    %v460 = vunpack.c.l.s8.bf16 %v152
    %v461 = vunpack.c.l.s8.bf16 %v153
    %v462 = vunpack.c.l.s8.bf16 %v154
    %v463 = vunpack.c.l.s8.bf16 %v155
    %v464 = vunpack.c.h.s8.bf16 %v152
    %v465 = vunpack.c.h.s8.bf16 %v153
    %v466 = vunpack.c.h.s8.bf16 %v154
    %v467 = vunpack.c.h.s8.bf16 %v155
    %v468 = vunpack.c.l.s8.bf16 %v156
    %v469 = vunpack.c.l.s8.bf16 %v157
    %v470 = vunpack.c.l.s8.bf16 %v158
    %v471 = vunpack.c.l.s8.bf16 %v159
    %v472 = vunpack.c.h.s8.bf16 %v156
    %v473 = vunpack.c.h.s8.bf16 %v157
    %v474 = vunpack.c.h.s8.bf16 %v158
    %v475 = vunpack.c.h.s8.bf16 %v159
    %v476 = vunpack.c.l.s8.bf16 %v160
    %v477 = vunpack.c.l.s8.bf16 %v161
    %v478 = vunpack.c.l.s8.bf16 %v162
    %v479 = vunpack.c.l.s8.bf16 %v163
    %v480 = vunpack.c.h.s8.bf16 %v160
    %v481 = vunpack.c.h.s8.bf16 %v161
    %v482 = vunpack.c.h.s8.bf16 %v162
    %v483 = vunpack.c.h.s8.bf16 %v163
    %v484 = vunpack.c.l.s8.bf16 %v164
    %v485 = vunpack.c.l.s8.bf16 %v165
    %v486 = vunpack.c.l.s8.bf16 %v166
    %v487 = vunpack.c.l.s8.bf16 %v167
    %v488 = vunpack.c.h.s8.bf16 %v164
    %v489 = vunpack.c.h.s8.bf16 %v165
    %v490 = vunpack.c.h.s8.bf16 %v166
    %v491 = vunpack.c.h.s8.bf16 %v167
    %v492 = vunpack.c.l.s8.bf16 %v168
    %v493 = vunpack.c.l.s8.bf16 %v169
    %v494 = vunpack.c.l.s8.bf16 %v170
    %v495 = vunpack.c.l.s8.bf16 %v171
    %v496 = vunpack.c.h.s8.bf16 %v168
    %v497 = vunpack.c.h.s8.bf16 %v169
    %v498 = vunpack.c.h.s8.bf16 %v170
    %v499 = vunpack.c.h.s8.bf16 %v171
    %v500 = vunpack.c.l.s8.bf16 %v172
    %v501 = vunpack.c.l.s8.bf16 %v173
    %v502 = vunpack.c.l.s8.bf16 %v174
    %v503 = vunpack.c.l.s8.bf16 %v175
    %v504 = vunpack.c.h.s8.bf16 %v172
    %v505 = vunpack.c.h.s8.bf16 %v173
    %v506 = vunpack.c.h.s8.bf16 %v174
    %v507 = vunpack.c.h.s8.bf16 %v175
    %v508 = vunpack.c.l.s8.bf16 %v176
    %v509 = vunpack.c.l.s8.bf16 %v177
    %v510 = vunpack.c.l.s8.bf16 %v178
    %v511 = vunpack.c.l.s8.bf16 %v179
    %v512 = vunpack.c.h.s8.bf16 %v176
    %v513 = vunpack.c.h.s8.bf16 %v177
    %v514 = vunpack.c.h.s8.bf16 %v178
    %v515 = vunpack.c.h.s8.bf16 %v179
    %v516 = vunpack.c.l.s8.bf16 %v180
    %v517 = vunpack.c.l.s8.bf16 %v181
    %v518 = vunpack.c.l.s8.bf16 %v182
    %v519 = vunpack.c.l.s8.bf16 %v183
    %v520 = vunpack.c.h.s8.bf16 %v180
    %v521 = vunpack.c.h.s8.bf16 %v181
    %v522 = vunpack.c.h.s8.bf16 %v182
    %v523 = vunpack.c.h.s8.bf16 %v183
    %v524 = vunpack.c.l.s8.bf16 %v184
    %v525 = vunpack.c.l.s8.bf16 %v185
    %v526 = vunpack.c.l.s8.bf16 %v186
    %v527 = vunpack.c.l.s8.bf16 %v187
    %v528 = vunpack.c.h.s8.bf16 %v184
    %v529 = vunpack.c.h.s8.bf16 %v185
    %v530 = vunpack.c.h.s8.bf16 %v186
    %v531 = vunpack.c.h.s8.bf16 %v187
    %v532 = vunpack.c.l.s8.bf16 %v188
    %v533 = vunpack.c.l.s8.bf16 %v189
    %v534 = vunpack.c.l.s8.bf16 %v190
    %v535 = vunpack.c.l.s8.bf16 %v191
    %v536 = vunpack.c.h.s8.bf16 %v188
    %v537 = vunpack.c.h.s8.bf16 %v189
    %v538 = vunpack.c.h.s8.bf16 %v190
    %v539 = vunpack.c.h.s8.bf16 %v191
    %v540 = vunpack.c.l.s8.bf16 %v192
    %v541 = vunpack.c.l.s8.bf16 %v193
    %v542 = vunpack.c.l.s8.bf16 %v194
    %v543 = vunpack.c.l.s8.bf16 %v195
    %v544 = vunpack.c.h.s8.bf16 %v192
    %v545 = vunpack.c.h.s8.bf16 %v193
    %v546 = vunpack.c.h.s8.bf16 %v194
    %v547 = vunpack.c.h.s8.bf16 %v195
    %v548 = vunpack.c.l.s8.bf16 %v196
    %v549 = vunpack.c.l.s8.bf16 %v197
    %v550 = vunpack.c.l.s8.bf16 %v198
    %v551 = vunpack.c.l.s8.bf16 %v199
    %v552 = vunpack.c.h.s8.bf16 %v196
    %v553 = vunpack.c.h.s8.bf16 %v197
    %v554 = vunpack.c.h.s8.bf16 %v198
    %v555 = vunpack.c.h.s8.bf16 %v199
    %v556 = vunpack.c.l.s8.bf16 %v200
    %v557 = vunpack.c.l.s8.bf16 %v201
    %v558 = vunpack.c.l.s8.bf16 %v202
    %v559 = vunpack.c.l.s8.bf16 %v203
    %v560 = vunpack.c.h.s8.bf16 %v200
    %v561 = vunpack.c.h.s8.bf16 %v201
    %v562 = vunpack.c.h.s8.bf16 %v202
    %v563 = vunpack.c.h.s8.bf16 %v203
    %v564 = vunpack.c.l.s8.bf16 %v204
    %v565 = vunpack.c.l.s8.bf16 %v205
    %v566 = vunpack.c.l.s8.bf16 %v206
    %v567 = vunpack.c.l.s8.bf16 %v207
    %v568 = vunpack.c.h.s8.bf16 %v204
    %v569 = vunpack.c.h.s8.bf16 %v205
    %v570 = vunpack.c.h.s8.bf16 %v206
    %v571 = vunpack.c.h.s8.bf16 %v207
    %v572 = vunpack.c.l.s8.bf16 %v208
    %v573 = vunpack.c.l.s8.bf16 %v209
    %v574 = vunpack.c.l.s8.bf16 %v210
    %v575 = vunpack.c.l.s8.bf16 %v211
    %v576 = vunpack.c.h.s8.bf16 %v208
    %v577 = vunpack.c.h.s8.bf16 %v209
    %v578 = vunpack.c.h.s8.bf16 %v210
    %v579 = vunpack.c.h.s8.bf16 %v211
    %v580 = vunpack.c.l.s8.bf16 %v212
    %v581 = vunpack.c.l.s8.bf16 %v213
    %v582 = vunpack.c.l.s8.bf16 %v214
    %v583 = vunpack.c.l.s8.bf16 %v215
    %v584 = vunpack.c.h.s8.bf16 %v212
    %v585 = vunpack.c.h.s8.bf16 %v213
    %v586 = vunpack.c.h.s8.bf16 %v214
    %v587 = vunpack.c.h.s8.bf16 %v215
    %v588 = vunpack.c.l.s8.bf16 %v216
    %v589 = vunpack.c.l.s8.bf16 %v217
    %v590 = vunpack.c.l.s8.bf16 %v218
    %v591 = vunpack.c.l.s8.bf16 %v219
    %v592 = vunpack.c.h.s8.bf16 %v216
    %v593 = vunpack.c.h.s8.bf16 %v217
    %v594 = vunpack.c.h.s8.bf16 %v218
    %v595 = vunpack.c.h.s8.bf16 %v219
    %v596 = vunpack.c.l.s8.bf16 %v220
    %v597 = vunpack.c.l.s8.bf16 %v221
    %v598 = vunpack.c.l.s8.bf16 %v222
    %v599 = vunpack.c.l.s8.bf16 %v223
    %v600 = vunpack.c.h.s8.bf16 %v220
    %v601 = vunpack.c.h.s8.bf16 %v221
    %v602 = vunpack.c.h.s8.bf16 %v222
    %v603 = vunpack.c.h.s8.bf16 %v223
    %v604 = vunpack.c.l.s8.bf16 %v224
    %v605 = vunpack.c.l.s8.bf16 %v225
    %v606 = vunpack.c.l.s8.bf16 %v226
    %v607 = vunpack.c.l.s8.bf16 %v227
    %v608 = vunpack.c.h.s8.bf16 %v224
    %v609 = vunpack.c.h.s8.bf16 %v225
    %v610 = vunpack.c.h.s8.bf16 %v226
    %v611 = vunpack.c.h.s8.bf16 %v227
    %v612 = vunpack.c.l.s8.bf16 %v228
    %v613 = vunpack.c.l.s8.bf16 %v229
    %v614 = vunpack.c.l.s8.bf16 %v230
    %v615 = vunpack.c.l.s8.bf16 %v231
    %v616 = vunpack.c.h.s8.bf16 %v228
    %v617 = vunpack.c.h.s8.bf16 %v229
    %v618 = vunpack.c.h.s8.bf16 %v230
    %v619 = vunpack.c.h.s8.bf16 %v231
    %v620 = vunpack.c.l.s8.bf16 %v232
    %v621 = vunpack.c.l.s8.bf16 %v233
    %v622 = vunpack.c.l.s8.bf16 %v234
    %v623 = vunpack.c.l.s8.bf16 %v235
    %v624 = vunpack.c.h.s8.bf16 %v232
    %v625 = vunpack.c.h.s8.bf16 %v233
    %v626 = vunpack.c.h.s8.bf16 %v234
    %v627 = vunpack.c.h.s8.bf16 %v235
    %v628 = vunpack.c.l.s8.bf16 %v236
    %v629 = vunpack.c.l.s8.bf16 %v237
    %v630 = vunpack.c.l.s8.bf16 %v238
    %v631 = vunpack.c.l.s8.bf16 %v239
    %v632 = vunpack.c.h.s8.bf16 %v236
    %v633 = vunpack.c.h.s8.bf16 %v237
    %v634 = vunpack.c.h.s8.bf16 %v238
    %v635 = vunpack.c.h.s8.bf16 %v239
    %v636 = vunpack.c.l.s8.bf16 %v240
    %v637 = vunpack.c.l.s8.bf16 %v241
    %v638 = vunpack.c.l.s8.bf16 %v242
    %v639 = vunpack.c.l.s8.bf16 %v243
    %v640 = vunpack.c.h.s8.bf16 %v240
    %v641 = vunpack.c.h.s8.bf16 %v241
    %v642 = vunpack.c.h.s8.bf16 %v242
    %v643 = vunpack.c.h.s8.bf16 %v243
    %v644 = vunpack.c.l.s8.bf16 %v244
    %v645 = vunpack.c.l.s8.bf16 %v245
    %v646 = vunpack.c.l.s8.bf16 %v246
    %v647 = vunpack.c.l.s8.bf16 %v247
    %v648 = vunpack.c.h.s8.bf16 %v244
    %v649 = vunpack.c.h.s8.bf16 %v245
    %v650 = vunpack.c.h.s8.bf16 %v246
    %v651 = vunpack.c.h.s8.bf16 %v247
    %v652 = vunpack.c.l.s8.bf16 %v248
    %v653 = vunpack.c.l.s8.bf16 %v249
    %v654 = vunpack.c.l.s8.bf16 %v250
    %v655 = vunpack.c.l.s8.bf16 %v251
    %v656 = vunpack.c.h.s8.bf16 %v248
    %v657 = vunpack.c.h.s8.bf16 %v249
    %v658 = vunpack.c.h.s8.bf16 %v250
    %v659 = vunpack.c.h.s8.bf16 %v251
    %v660 = vunpack.c.l.s8.bf16 %v252
    %v661 = vunpack.c.l.s8.bf16 %v253
    %v662 = vunpack.c.l.s8.bf16 %v254
    %v663 = vunpack.c.l.s8.bf16 %v255
    %v664 = vunpack.c.h.s8.bf16 %v252
    %v665 = vunpack.c.h.s8.bf16 %v253
    %v666 = vunpack.c.h.s8.bf16 %v254
    %v667 = vunpack.c.h.s8.bf16 %v255
    %v668 = vunpack.c.l.s8.bf16 %v256
    %v669 = vunpack.c.l.s8.bf16 %v257
    %v670 = vunpack.c.l.s8.bf16 %v258
    %v671 = vunpack.c.l.s8.bf16 %v259
    %v672 = vunpack.c.h.s8.bf16 %v256
    %v673 = vunpack.c.h.s8.bf16 %v257
    %v674 = vunpack.c.h.s8.bf16 %v258
    %v675 = vunpack.c.h.s8.bf16 %v259
    %v676 = vunpack.c.l.s8.bf16 %v260
    %v677 = vunpack.c.l.s8.bf16 %v261
    %v678 = vunpack.c.l.s8.bf16 %v262
    %v679 = vunpack.c.l.s8.bf16 %v263
    %v680 = vunpack.c.h.s8.bf16 %v260
    %v681 = vunpack.c.h.s8.bf16 %v261
    %v682 = vunpack.c.h.s8.bf16 %v262
    %v683 = vunpack.c.h.s8.bf16 %v263
    %v684 = vunpack.c.l.s8.bf16 %v264
    %v685 = vunpack.c.l.s8.bf16 %v265
    %v686 = vunpack.c.l.s8.bf16 %v266
    %v687 = vunpack.c.l.s8.bf16 %v267
    %v688 = vunpack.c.h.s8.bf16 %v264
    %v689 = vunpack.c.h.s8.bf16 %v265
    %v690 = vunpack.c.h.s8.bf16 %v266
    %v691 = vunpack.c.h.s8.bf16 %v267
    %v692 = vunpack.c.l.s8.bf16 %v268
    %v693 = vunpack.c.l.s8.bf16 %v269
    %v694 = vunpack.c.l.s8.bf16 %v270
    %v695 = vunpack.c.l.s8.bf16 %v271
    %v696 = vunpack.c.h.s8.bf16 %v268
    %v697 = vunpack.c.h.s8.bf16 %v269
    %v698 = vunpack.c.h.s8.bf16 %v270
    %v699 = vunpack.c.h.s8.bf16 %v271
    %v700 = vunpack.c.l.s8.bf16 %v272
    %v701 = vunpack.c.l.s8.bf16 %v273
    %v702 = vunpack.c.l.s8.bf16 %v274
    %v703 = vunpack.c.l.s8.bf16 %v275
    %v704 = vunpack.c.h.s8.bf16 %v272
    %v705 = vunpack.c.h.s8.bf16 %v273
    %v706 = vunpack.c.h.s8.bf16 %v274
    %v707 = vunpack.c.h.s8.bf16 %v275
    %v708 = vunpack.c.l.s8.bf16 %v276
    %v709 = vunpack.c.l.s8.bf16 %v277
    %v710 = vunpack.c.l.s8.bf16 %v278
    %v711 = vunpack.c.l.s8.bf16 %v279
    %v712 = vunpack.c.h.s8.bf16 %v276
    %v713 = vunpack.c.h.s8.bf16 %v277
    %v714 = vunpack.c.h.s8.bf16 %v278
    %v715 = vunpack.c.h.s8.bf16 %v279
    %v716 = vunpack.c.l.s8.bf16 %v280
    %v717 = vunpack.c.l.s8.bf16 %v281
    %v718 = vunpack.c.l.s8.bf16 %v282
    %v719 = vunpack.c.l.s8.bf16 %v283
    %v720 = vunpack.c.h.s8.bf16 %v280
    %v721 = vunpack.c.h.s8.bf16 %v281
    %v722 = vunpack.c.h.s8.bf16 %v282
    %v723 = vunpack.c.h.s8.bf16 %v283
    %v724 = vunpack.c.l.s8.bf16 %v284
    %v725 = vunpack.c.l.s8.bf16 %v285
    %v726 = vunpack.c.l.s8.bf16 %v286
    %v727 = vunpack.c.l.s8.bf16 %v287
    %v728 = vunpack.c.h.s8.bf16 %v284
    %v729 = vunpack.c.h.s8.bf16 %v285
    %v730 = vunpack.c.h.s8.bf16 %v286
    %v731 = vunpack.c.h.s8.bf16 %v287
    %v732 = vunpack.c.l.s8.bf16 %v288
    %v733 = vunpack.c.l.s8.bf16 %v289
    %v734 = vunpack.c.l.s8.bf16 %v290
    %v735 = vunpack.c.l.s8.bf16 %v291
    %v736 = vunpack.c.h.s8.bf16 %v288
    %v737 = vunpack.c.h.s8.bf16 %v289
    %v738 = vunpack.c.h.s8.bf16 %v290
    %v739 = vunpack.c.h.s8.bf16 %v291
    %v740 = vunpack.c.l.s8.bf16 %v292
    %v741 = vunpack.c.l.s8.bf16 %v293
    %v742 = vunpack.c.l.s8.bf16 %v294
    %v743 = vunpack.c.l.s8.bf16 %v295
    %v744 = vunpack.c.h.s8.bf16 %v292
    %v745 = vunpack.c.h.s8.bf16 %v293
    %v746 = vunpack.c.h.s8.bf16 %v294
    %v747 = vunpack.c.h.s8.bf16 %v295
    %v748 = vunpack.c.l.s8.bf16 %v296
    %v749 = vunpack.c.l.s8.bf16 %v297
    %v750 = vunpack.c.l.s8.bf16 %v298
    %v751 = vunpack.c.l.s8.bf16 %v299
    %v752 = vunpack.c.h.s8.bf16 %v296
    %v753 = vunpack.c.h.s8.bf16 %v297
    %v754 = vunpack.c.h.s8.bf16 %v298
    %v755 = vunpack.c.h.s8.bf16 %v299
    %v756 = vunpack.c.l.s8.bf16 %v300
    %v757 = vunpack.c.l.s8.bf16 %v301
    %v758 = vunpack.c.l.s8.bf16 %v302
    %v759 = vunpack.c.l.s8.bf16 %v303
    %v760 = vunpack.c.h.s8.bf16 %v300
    %v761 = vunpack.c.h.s8.bf16 %v301
    %v762 = vunpack.c.h.s8.bf16 %v302
    %v763 = vunpack.c.h.s8.bf16 %v303
    %v764 = vunpack.c.l.s8.bf16 %v304
    %v765 = vunpack.c.l.s8.bf16 %v305
    %v766 = vunpack.c.l.s8.bf16 %v306
    %v767 = vunpack.c.l.s8.bf16 %v307
    %v768 = vunpack.c.h.s8.bf16 %v304
    %v769 = vunpack.c.h.s8.bf16 %v305
    %v770 = vunpack.c.h.s8.bf16 %v306
    %v771 = vunpack.c.h.s8.bf16 %v307
    %v772 = vunpack.c.l.s8.bf16 %v308
    %v773 = vunpack.c.l.s8.bf16 %v309
    %v774 = vunpack.c.l.s8.bf16 %v310
    %v775 = vunpack.c.l.s8.bf16 %v311
    %v776 = vunpack.c.h.s8.bf16 %v308
    %v777 = vunpack.c.h.s8.bf16 %v309
    %v778 = vunpack.c.h.s8.bf16 %v310
    %v779 = vunpack.c.h.s8.bf16 %v311
    %v780 = vunpack.c.l.s8.bf16 %v312
    %v781 = vunpack.c.l.s8.bf16 %v313
    %v782 = vunpack.c.l.s8.bf16 %v314
    %v783 = vunpack.c.l.s8.bf16 %v315
    %v784 = vunpack.c.h.s8.bf16 %v312
    %v785 = vunpack.c.h.s8.bf16 %v313
    %v786 = vunpack.c.h.s8.bf16 %v314
    %v787 = vunpack.c.h.s8.bf16 %v315
    %v788 = vunpack.c.l.s8.bf16 %v316
    %v789 = vunpack.c.l.s8.bf16 %v317
    %v790 = vunpack.c.l.s8.bf16 %v318
    %v791 = vunpack.c.l.s8.bf16 %v319
    %v792 = vunpack.c.h.s8.bf16 %v316
    %v793 = vunpack.c.h.s8.bf16 %v317
    %v794 = vunpack.c.h.s8.bf16 %v318
    %v795 = vunpack.c.h.s8.bf16 %v319
    %v796 = vunpack.c.l.s8.bf16 %v320
    %v797 = vunpack.c.l.s8.bf16 %v321
    %v798 = vunpack.c.l.s8.bf16 %v322
    %v799 = vunpack.c.l.s8.bf16 %v323
    %v800 = vunpack.c.h.s8.bf16 %v320
    %v801 = vunpack.c.h.s8.bf16 %v321
    %v802 = vunpack.c.h.s8.bf16 %v322
    %v803 = vunpack.c.h.s8.bf16 %v323
    %v804 = vunpack.c.l.s8.bf16 %v324
    %v805 = vunpack.c.l.s8.bf16 %v325
    %v806 = vunpack.c.l.s8.bf16 %v326
    %v807 = vunpack.c.l.s8.bf16 %v327
    %v808 = vunpack.c.h.s8.bf16 %v324
    %v809 = vunpack.c.h.s8.bf16 %v325
    %v810 = vunpack.c.h.s8.bf16 %v326
    %v811 = vunpack.c.h.s8.bf16 %v327
    %v812 = vunpack.c.l.s8.bf16 %v328
    %v813 = vunpack.c.l.s8.bf16 %v329
    %v814 = vunpack.c.l.s8.bf16 %v330
    %v815 = vunpack.c.l.s8.bf16 %v331
    %v816 = vunpack.c.h.s8.bf16 %v328
    %v817 = vunpack.c.h.s8.bf16 %v329
    %v818 = vunpack.c.h.s8.bf16 %v330
    %v819 = vunpack.c.h.s8.bf16 %v331
    %v820 = vunpack.c.l.s8.bf16 %v332
    %v821 = vunpack.c.l.s8.bf16 %v333
    %v822 = vunpack.c.l.s8.bf16 %v334
    %v823 = vunpack.c.l.s8.bf16 %v335
    %v824 = vunpack.c.h.s8.bf16 %v332
    %v825 = vunpack.c.h.s8.bf16 %v333
    %v826 = vunpack.c.h.s8.bf16 %v334
    %v827 = vunpack.c.h.s8.bf16 %v335
    %v828 = vunpack.c.l.s8.bf16 %v336
    %v829 = vunpack.c.l.s8.bf16 %v337
    %v830 = vunpack.c.l.s8.bf16 %v338
    %v831 = vunpack.c.l.s8.bf16 %v339
    %v832 = vunpack.c.h.s8.bf16 %v336
    %v833 = vunpack.c.h.s8.bf16 %v337
    %v834 = vunpack.c.h.s8.bf16 %v338
    %v835 = vunpack.c.h.s8.bf16 %v339
    %v836 = vunpack.c.l.s8.bf16 %v340
    %v837 = vunpack.c.l.s8.bf16 %v341
    %v838 = vunpack.c.l.s8.bf16 %v342
    %v839 = vunpack.c.l.s8.bf16 %v343
    %v840 = vunpack.c.h.s8.bf16 %v340
    %v841 = vunpack.c.h.s8.bf16 %v341
    %v842 = vunpack.c.h.s8.bf16 %v342
    %v843 = vunpack.c.h.s8.bf16 %v343
    %v844 = vunpack.c.l.s8.bf16 %v344
    %v845 = vunpack.c.l.s8.bf16 %v345
    %v846 = vunpack.c.l.s8.bf16 %v346
    %v847 = vunpack.c.l.s8.bf16 %v347
    %v848 = vunpack.c.h.s8.bf16 %v344
    %v849 = vunpack.c.h.s8.bf16 %v345
    %v850 = vunpack.c.h.s8.bf16 %v346
    %v851 = vunpack.c.h.s8.bf16 %v347
    %v852 = vunpack.c.l.s8.bf16 %v348
    %v853 = vunpack.c.l.s8.bf16 %v349
    %v854 = vunpack.c.l.s8.bf16 %v350
    %v855 = vunpack.c.l.s8.bf16 %v351
    %v856 = vunpack.c.h.s8.bf16 %v348
    %v857 = vunpack.c.h.s8.bf16 %v349
    %v858 = vunpack.c.h.s8.bf16 %v350
    %v859 = vunpack.c.h.s8.bf16 %v351
    %v860 = vunpack.c.l.s8.bf16 %v352
    %v861 = vunpack.c.l.s8.bf16 %v353
    %v862 = vunpack.c.l.s8.bf16 %v354
    %v863 = vunpack.c.l.s8.bf16 %v355
    %v864 = vunpack.c.h.s8.bf16 %v352
    %v865 = vunpack.c.h.s8.bf16 %v353
    %v866 = vunpack.c.h.s8.bf16 %v354
    %v867 = vunpack.c.h.s8.bf16 %v355
    %868 = vmatprep.subr.bf16.mxu0 %v357
    %869 = vmatpush1.bf16.msra.mxu0 %v356
    %870 = vmatprep.subr.bf16.mxu0 %v361
    %871 = vmatpush1.bf16.msra.mxu0 %v360
    %872 = vmatprep.subr.bf16.mxu0 %v365
    %873 = vmatpush1.bf16.msra.mxu0 %v364
    %874 = vmatprep.subr.bf16.mxu0 %v369
    %875 = vmatpush1.bf16.msra.mxu0 %v368
    %876 = vmatprep.subr.bf16.mxu0 %v373
    %877 = vmatpush1.bf16.msra.mxu0 %v372
    %878 = vmatprep.subr.bf16.mxu0 %v377
    %879 = vmatpush1.bf16.msra.mxu0 %v376
    %880 = vmatprep.subr.bf16.mxu0 %v381
    %881 = vmatpush1.bf16.msra.mxu0 %v380
    %882 = vmatprep.subr.bf16.mxu0 %v385
    %883 = vmatpush1.bf16.msra.mxu0 %v384
    %884 = vmatprep.subr.bf16.mxu0 %v389
    %885 = vmatpush1.bf16.msra.mxu0 %v388
    %886 = vmatprep.subr.bf16.mxu0 %v393
    %887 = vmatpush1.bf16.msra.mxu0 %v392
    %888 = vmatprep.subr.bf16.mxu0 %v397
    %889 = vmatpush1.bf16.msra.mxu0 %v396
    %890 = vmatprep.subr.bf16.mxu0 %v401
    %891 = vmatpush1.bf16.msra.mxu0 %v400
    %892 = vmatprep.subr.bf16.mxu0 %v405
    %893 = vmatpush1.bf16.msra.mxu0 %v404
    %894 = vmatprep.subr.bf16.mxu0 %v409
    %895 = vmatpush1.bf16.msra.mxu0 %v408
    %896 = vmatprep.subr.bf16.mxu0 %v413
    %897 = vmatpush1.bf16.msra.mxu0 %v412
    %898 = vmatprep.subr.bf16.mxu0 %v417
    %899 = vmatpush1.bf16.msra.mxu0 %v416
    %900 = vmatprep.mubr.bf16.mxu0 %v85
    %901 = vmatmul.mubr.bf16.gmra.mrb[0].mxu0 %v84
    %v902 = vpop.f32.mrb[0].mxu0
    %v903 = vadd.f32 0.0, %v902
    %v904 = vpop.f32.mrb[0].mxu0
    %v905 = vadd.f32 0.0, %v904
    %v906 = vpop.f32.mrb[0].mxu0
    %v907 = vpop.f32.mrb[0].mxu0
    %908 = vdwg.mxu0
    %909 = vmatprep.subr.bf16.mxu0 %v421
    %910 = vmatpush1.bf16.msra.mxu0 %v420
    %911 = vmatprep.subr.bf16.mxu0 %v425
    %912 = vmatpush1.bf16.msra.mxu0 %v424
    %913 = vmatprep.subr.bf16.mxu0 %v429
    %914 = vmatpush1.bf16.msra.mxu0 %v428
    %915 = vmatprep.subr.bf16.mxu0 %v433
    %916 = vmatpush1.bf16.msra.mxu0 %v432
    %917 = vmatprep.subr.bf16.mxu0 %v437
    %918 = vmatpush1.bf16.msra.mxu0 %v436
    %919 = vmatprep.subr.bf16.mxu0 %v441
    %920 = vmatpush1.bf16.msra.mxu0 %v440
    %921 = vmatprep.subr.bf16.mxu0 %v445
    %922 = vmatpush1.bf16.msra.mxu0 %v444
    %923 = vmatprep.subr.bf16.mxu0 %v449
    %924 = vmatpush1.bf16.msra.mxu0 %v448
    %925 = vmatprep.subr.bf16.mxu0 %v453
    %926 = vmatpush1.bf16.msra.mxu0 %v452
    %927 = vmatprep.subr.bf16.mxu0 %v457
    %928 = vmatpush1.bf16.msra.mxu0 %v456
    %929 = vmatprep.subr.bf16.mxu0 %v461
    %930 = vmatpush1.bf16.msra.mxu0 %v460
    %931 = vmatprep.subr.bf16.mxu0 %v465
    %932 = vmatpush1.bf16.msra.mxu0 %v464
    %933 = vmatprep.subr.bf16.mxu0 %v469
    %934 = vmatpush1.bf16.msra.mxu0 %v468
    %935 = vmatprep.subr.bf16.mxu0 %v473
    %936 = vmatpush1.bf16.msra.mxu0 %v472
    %937 = vmatprep.subr.bf16.mxu0 %v477
    %938 = vmatpush1.bf16.msra.mxu0 %v476
    %939 = vmatprep.subr.bf16.mxu0 %v481
    %940 = vmatpush1.bf16.msra.mxu0 %v480
    %941 = vmatprep.mubr.bf16.mxu0 %v87
    %942 = vmatmul.mubr.bf16.gmra.mrb[0].mxu0 %v86
    %v943 = vpop.f32.mrb[0].mxu0
    %v944 = vadd.f32 %v903, %v943
    %v945 = vpop.f32.mrb[0].mxu0
    %v946 = vadd.f32 %v905, %v945
    %v947 = vpop.f32.mrb[0].mxu0
    %v948 = vpop.f32.mrb[0].mxu0
    %949 = vdwg.mxu0
    %950 = vmatprep.subr.bf16.mxu0 %v485
    %951 = vmatpush1.bf16.msra.mxu0 %v484
    %952 = vmatprep.subr.bf16.mxu0 %v489
    %953 = vmatpush1.bf16.msra.mxu0 %v488
    %954 = vmatprep.subr.bf16.mxu0 %v493
    %955 = vmatpush1.bf16.msra.mxu0 %v492
    %956 = vmatprep.subr.bf16.mxu0 %v497
    %957 = vmatpush1.bf16.msra.mxu0 %v496
    %958 = vmatprep.subr.bf16.mxu0 %v501
    %959 = vmatpush1.bf16.msra.mxu0 %v500
    %960 = vmatprep.subr.bf16.mxu0 %v505
    %961 = vmatpush1.bf16.msra.mxu0 %v504
    %962 = vmatprep.subr.bf16.mxu0 %v509
    %963 = vmatpush1.bf16.msra.mxu0 %v508
    %964 = vmatprep.subr.bf16.mxu0 %v513
    %965 = vmatpush1.bf16.msra.mxu0 %v512
    %966 = vmatprep.subr.bf16.mxu0 %v517
    %967 = vmatpush1.bf16.msra.mxu0 %v516
    %968 = vmatprep.subr.bf16.mxu0 %v521
    %969 = vmatpush1.bf16.msra.mxu0 %v520
    %970 = vmatprep.subr.bf16.mxu0 %v525
    %971 = vmatpush1.bf16.msra.mxu0 %v524
    %972 = vmatprep.subr.bf16.mxu0 %v529
    %973 = vmatpush1.bf16.msra.mxu0 %v528
    %974 = vmatprep.subr.bf16.mxu0 %v533
    %975 = vmatpush1.bf16.msra.mxu0 %v532
    %976 = vmatprep.subr.bf16.mxu0 %v537
    %977 = vmatpush1.bf16.msra.mxu0 %v536
    %978 = vmatprep.subr.bf16.mxu0 %v541
    %979 = vmatpush1.bf16.msra.mxu0 %v540
    %980 = vmatprep.subr.bf16.mxu0 %v545
    %981 = vmatpush1.bf16.msra.mxu0 %v544
    %982 = vmatprep.mubr.bf16.mxu0 %v89
    %983 = vmatmul.mubr.bf16.gmra.mrb[0].mxu0 %v88
    %v984 = vpop.f32.mrb[0].mxu0
    %v985 = vadd.f32 %v944, %v984
    %v986 = vpop.f32.mrb[0].mxu0
    %v987 = vadd.f32 %v946, %v986
    %v988 = vpop.f32.mrb[0].mxu0
    %v989 = vpop.f32.mrb[0].mxu0
    %990 = vdwg.mxu0
    %991 = vmatprep.subr.bf16.mxu0 %v549
    %992 = vmatpush1.bf16.msra.mxu0 %v548
    %993 = vmatprep.subr.bf16.mxu0 %v553
    %994 = vmatpush1.bf16.msra.mxu0 %v552
    %995 = vmatprep.subr.bf16.mxu0 %v557
    %996 = vmatpush1.bf16.msra.mxu0 %v556
    %997 = vmatprep.subr.bf16.mxu0 %v561
    %998 = vmatpush1.bf16.msra.mxu0 %v560
    %999 = vmatprep.subr.bf16.mxu0 %v565
    %1000 = vmatpush1.bf16.msra.mxu0 %v564
    %1001 = vmatprep.subr.bf16.mxu0 %v569
    %1002 = vmatpush1.bf16.msra.mxu0 %v568
    %1003 = vmatprep.subr.bf16.mxu0 %v573
    %1004 = vmatpush1.bf16.msra.mxu0 %v572
    %1005 = vmatprep.subr.bf16.mxu0 %v577
    %1006 = vmatpush1.bf16.msra.mxu0 %v576
    %1007 = vmatprep.subr.bf16.mxu0 %v581
    %1008 = vmatpush1.bf16.msra.mxu0 %v580
    %1009 = vmatprep.subr.bf16.mxu0 %v585
    %1010 = vmatpush1.bf16.msra.mxu0 %v584
    %1011 = vmatprep.subr.bf16.mxu0 %v589
    %1012 = vmatpush1.bf16.msra.mxu0 %v588
    %1013 = vmatprep.subr.bf16.mxu0 %v593
    %1014 = vmatpush1.bf16.msra.mxu0 %v592
    %1015 = vmatprep.subr.bf16.mxu0 %v597
    %1016 = vmatpush1.bf16.msra.mxu0 %v596
    %1017 = vmatprep.subr.bf16.mxu0 %v601
    %1018 = vmatpush1.bf16.msra.mxu0 %v600
    %1019 = vmatprep.subr.bf16.mxu0 %v605
    %1020 = vmatpush1.bf16.msra.mxu0 %v604
    %1021 = vmatprep.subr.bf16.mxu0 %v609
    %1022 = vmatpush1.bf16.msra.mxu0 %v608
    %1023 = vmatprep.mubr.bf16.mxu0 %v91
    %1024 = vmatmul.mubr.bf16.gmra.mrb[0].mxu0 %v90
    %v1025 = vpop.f32.mrb[0].mxu0
    %v1026 = vadd.f32 %v985, %v1025
    %v1027 = vpop.f32.mrb[0].mxu0
    %v1028 = vadd.f32 %v987, %v1027
    %v1029 = vpop.f32.mrb[0].mxu0
    %v1030 = vpop.f32.mrb[0].mxu0
    %1031 = vdwg.mxu0
    %1032 = vmatprep.subr.bf16.mxu0 %v613
    %1033 = vmatpush1.bf16.msra.mxu0 %v612
    %1034 = vmatprep.subr.bf16.mxu0 %v617
    %1035 = vmatpush1.bf16.msra.mxu0 %v616
    %1036 = vmatprep.subr.bf16.mxu0 %v621
    %1037 = vmatpush1.bf16.msra.mxu0 %v620
    %1038 = vmatprep.subr.bf16.mxu0 %v625
    %1039 = vmatpush1.bf16.msra.mxu0 %v624
    %1040 = vmatprep.subr.bf16.mxu0 %v629
    %1041 = vmatpush1.bf16.msra.mxu0 %v628
    %1042 = vmatprep.subr.bf16.mxu0 %v633
    %1043 = vmatpush1.bf16.msra.mxu0 %v632
    %1044 = vmatprep.subr.bf16.mxu0 %v637
    %1045 = vmatpush1.bf16.msra.mxu0 %v636
    %1046 = vmatprep.subr.bf16.mxu0 %v641
    %1047 = vmatpush1.bf16.msra.mxu0 %v640
    %1048 = vmatprep.subr.bf16.mxu0 %v645
    %1049 = vmatpush1.bf16.msra.mxu0 %v644
    %1050 = vmatprep.subr.bf16.mxu0 %v649
    %1051 = vmatpush1.bf16.msra.mxu0 %v648
    %1052 = vmatprep.subr.bf16.mxu0 %v653
    %1053 = vmatpush1.bf16.msra.mxu0 %v652
    %1054 = vmatprep.subr.bf16.mxu0 %v657
    %1055 = vmatpush1.bf16.msra.mxu0 %v656
    %1056 = vmatprep.subr.bf16.mxu0 %v661
    %1057 = vmatpush1.bf16.msra.mxu0 %v660
    %1058 = vmatprep.subr.bf16.mxu0 %v665
    %1059 = vmatpush1.bf16.msra.mxu0 %v664
    %1060 = vmatprep.subr.bf16.mxu0 %v669
    %1061 = vmatpush1.bf16.msra.mxu0 %v668
    %1062 = vmatprep.subr.bf16.mxu0 %v673
    %1063 = vmatpush1.bf16.msra.mxu0 %v672
    %1064 = vmatprep.mubr.bf16.mxu0 %v93
    %1065 = vmatmul.mubr.bf16.gmra.mrb[0].mxu0 %v92
    %v1066 = vpop.f32.mrb[0].mxu0
    %v1067 = vadd.f32 %v1026, %v1066
    %v1068 = vpop.f32.mrb[0].mxu0
    %v1069 = vadd.f32 %v1028, %v1068
    %v1070 = vpop.f32.mrb[0].mxu0
    %v1071 = vpop.f32.mrb[0].mxu0
    %1072 = vdwg.mxu0
    %1073 = vmatprep.subr.bf16.mxu0 %v677
    %1074 = vmatpush1.bf16.msra.mxu0 %v676
    %1075 = vmatprep.subr.bf16.mxu0 %v681
    %1076 = vmatpush1.bf16.msra.mxu0 %v680
    %1077 = vmatprep.subr.bf16.mxu0 %v685
    %1078 = vmatpush1.bf16.msra.mxu0 %v684
    %1079 = vmatprep.subr.bf16.mxu0 %v689
    %1080 = vmatpush1.bf16.msra.mxu0 %v688
    %1081 = vmatprep.subr.bf16.mxu0 %v693
    %1082 = vmatpush1.bf16.msra.mxu0 %v692
    %1083 = vmatprep.subr.bf16.mxu0 %v697
    %1084 = vmatpush1.bf16.msra.mxu0 %v696
    %1085 = vmatprep.subr.bf16.mxu0 %v701
    %1086 = vmatpush1.bf16.msra.mxu0 %v700
    %1087 = vmatprep.subr.bf16.mxu0 %v705
    %1088 = vmatpush1.bf16.msra.mxu0 %v704
    %1089 = vmatprep.subr.bf16.mxu0 %v709
    %1090 = vmatpush1.bf16.msra.mxu0 %v708
    %1091 = vmatprep.subr.bf16.mxu0 %v713
    %1092 = vmatpush1.bf16.msra.mxu0 %v712
    %1093 = vmatprep.subr.bf16.mxu0 %v717
    %1094 = vmatpush1.bf16.msra.mxu0 %v716
    %1095 = vmatprep.subr.bf16.mxu0 %v721
    %1096 = vmatpush1.bf16.msra.mxu0 %v720
    %1097 = vmatprep.subr.bf16.mxu0 %v725
    %1098 = vmatpush1.bf16.msra.mxu0 %v724
    %1099 = vmatprep.subr.bf16.mxu0 %v729
    %1100 = vmatpush1.bf16.msra.mxu0 %v728
    %1101 = vmatprep.subr.bf16.mxu0 %v733
    %1102 = vmatpush1.bf16.msra.mxu0 %v732
    %1103 = vmatprep.subr.bf16.mxu0 %v737
    %1104 = vmatpush1.bf16.msra.mxu0 %v736
    %1105 = vmatprep.mubr.bf16.mxu0 %v95
    %1106 = vmatmul.mubr.bf16.gmra.mrb[0].mxu0 %v94
    %v1107 = vpop.f32.mrb[0].mxu0
    %v1108 = vadd.f32 %v1067, %v1107
    %v1109 = vpop.f32.mrb[0].mxu0
    %v1110 = vadd.f32 %v1069, %v1109
    %v1111 = vpop.f32.mrb[0].mxu0
    %v1112 = vpop.f32.mrb[0].mxu0
    %1113 = vdwg.mxu0
    %1114 = vmatprep.subr.bf16.mxu0 %v741
    %1115 = vmatpush1.bf16.msra.mxu0 %v740
    %1116 = vmatprep.subr.bf16.mxu0 %v745
    %1117 = vmatpush1.bf16.msra.mxu0 %v744
    %1118 = vmatprep.subr.bf16.mxu0 %v749
    %1119 = vmatpush1.bf16.msra.mxu0 %v748
    %1120 = vmatprep.subr.bf16.mxu0 %v753
    %1121 = vmatpush1.bf16.msra.mxu0 %v752
    %1122 = vmatprep.subr.bf16.mxu0 %v757
    %1123 = vmatpush1.bf16.msra.mxu0 %v756
    %1124 = vmatprep.subr.bf16.mxu0 %v761
    %1125 = vmatpush1.bf16.msra.mxu0 %v760
    %1126 = vmatprep.subr.bf16.mxu0 %v765
    %1127 = vmatpush1.bf16.msra.mxu0 %v764
    %1128 = vmatprep.subr.bf16.mxu0 %v769
    %1129 = vmatpush1.bf16.msra.mxu0 %v768
    %1130 = vmatprep.subr.bf16.mxu0 %v773
    %1131 = vmatpush1.bf16.msra.mxu0 %v772
    %1132 = vmatprep.subr.bf16.mxu0 %v777
    %1133 = vmatpush1.bf16.msra.mxu0 %v776
    %1134 = vmatprep.subr.bf16.mxu0 %v781
    %1135 = vmatpush1.bf16.msra.mxu0 %v780
    %1136 = vmatprep.subr.bf16.mxu0 %v785
    %1137 = vmatpush1.bf16.msra.mxu0 %v784
    %1138 = vmatprep.subr.bf16.mxu0 %v789
    %1139 = vmatpush1.bf16.msra.mxu0 %v788
    %1140 = vmatprep.subr.bf16.mxu0 %v793
    %1141 = vmatpush1.bf16.msra.mxu0 %v792
    %1142 = vmatprep.subr.bf16.mxu0 %v797
    %1143 = vmatpush1.bf16.msra.mxu0 %v796
    %1144 = vmatprep.subr.bf16.mxu0 %v801
    %1145 = vmatpush1.bf16.msra.mxu0 %v800
    %1146 = vmatprep.mubr.bf16.mxu0 %v97
    %1147 = vmatmul.mubr.bf16.gmra.mrb[0].mxu0 %v96
    %v1148 = vpop.f32.mrb[0].mxu0
    %v1149 = vadd.f32 %v1108, %v1148
    %v1150 = vpop.f32.mrb[0].mxu0
    %v1151 = vadd.f32 %v1110, %v1150
    %v1152 = vpop.f32.mrb[0].mxu0
    %v1153 = vpop.f32.mrb[0].mxu0
    %1154 = vdwg.mxu0
    %1155 = vmatprep.subr.bf16.mxu0 %v805
    %1156 = vmatpush1.bf16.msra.mxu0 %v804
    %1157 = vmatprep.subr.bf16.mxu0 %v809
    %1158 = vmatpush1.bf16.msra.mxu0 %v808
    %1159 = vmatprep.subr.bf16.mxu0 %v813
    %1160 = vmatpush1.bf16.msra.mxu0 %v812
    %1161 = vmatprep.subr.bf16.mxu0 %v817
    %1162 = vmatpush1.bf16.msra.mxu0 %v816
    %1163 = vmatprep.subr.bf16.mxu0 %v821
    %1164 = vmatpush1.bf16.msra.mxu0 %v820
    %1165 = vmatprep.subr.bf16.mxu0 %v825
    %1166 = vmatpush1.bf16.msra.mxu0 %v824
    %1167 = vmatprep.subr.bf16.mxu0 %v829
    %1168 = vmatpush1.bf16.msra.mxu0 %v828
    %1169 = vmatprep.subr.bf16.mxu0 %v833
    %1170 = vmatpush1.bf16.msra.mxu0 %v832
    %1171 = vmatprep.subr.bf16.mxu0 %v837
    %1172 = vmatpush1.bf16.msra.mxu0 %v836
    %1173 = vmatprep.subr.bf16.mxu0 %v841
    %1174 = vmatpush1.bf16.msra.mxu0 %v840
    %1175 = vmatprep.subr.bf16.mxu0 %v845
    %1176 = vmatpush1.bf16.msra.mxu0 %v844
    %1177 = vmatprep.subr.bf16.mxu0 %v849
    %1178 = vmatpush1.bf16.msra.mxu0 %v848
    %1179 = vmatprep.subr.bf16.mxu0 %v853
    %1180 = vmatpush1.bf16.msra.mxu0 %v852
    %1181 = vmatprep.subr.bf16.mxu0 %v857
    %1182 = vmatpush1.bf16.msra.mxu0 %v856
    %1183 = vmatprep.subr.bf16.mxu0 %v861
    %1184 = vmatpush1.bf16.msra.mxu0 %v860
    %1185 = vmatprep.subr.bf16.mxu0 %v865
    %1186 = vmatpush1.bf16.msra.mxu0 %v864
    %1187 = vmatprep.mubr.bf16.mxu0 %v99
    %1188 = vmatmul.mubr.bf16.gmra.mrb[0].mxu0 %v98
    %v1189 = vpop.f32.mrb[0].mxu0
    %v1190 = vadd.f32 %v1149, %v1189
    %v1191 = vpop.f32.mrb[0].mxu0
    %v1192 = vadd.f32 %v1151, %v1191
    %v1193 = vpop.f32.mrb[0].mxu0
    %v1194 = vpop.f32.mrb[0].mxu0
    %1195 = vdwg.mxu0
    %1196 = vmatprep.subr.bf16.mxu0 %v359
    %1197 = vmatpush1.bf16.msra.mxu0 %v358
    %1198 = vmatprep.subr.bf16.mxu0 %v363
    %1199 = vmatpush1.bf16.msra.mxu0 %v362
    %1200 = vmatprep.subr.bf16.mxu0 %v367
    %1201 = vmatpush1.bf16.msra.mxu0 %v366
    %1202 = vmatprep.subr.bf16.mxu0 %v371
    %1203 = vmatpush1.bf16.msra.mxu0 %v370
    %1204 = vmatprep.subr.bf16.mxu0 %v375
    %1205 = vmatpush1.bf16.msra.mxu0 %v374
    %1206 = vmatprep.subr.bf16.mxu0 %v379
    %1207 = vmatpush1.bf16.msra.mxu0 %v378
    %1208 = vmatprep.subr.bf16.mxu0 %v383
    %1209 = vmatpush1.bf16.msra.mxu0 %v382
    %1210 = vmatprep.subr.bf16.mxu0 %v387
    %1211 = vmatpush1.bf16.msra.mxu0 %v386
    %1212 = vmatprep.subr.bf16.mxu0 %v391
    %1213 = vmatpush1.bf16.msra.mxu0 %v390
    %1214 = vmatprep.subr.bf16.mxu0 %v395
    %1215 = vmatpush1.bf16.msra.mxu0 %v394
    %1216 = vmatprep.subr.bf16.mxu0 %v399
    %1217 = vmatpush1.bf16.msra.mxu0 %v398
    %1218 = vmatprep.subr.bf16.mxu0 %v403
    %1219 = vmatpush1.bf16.msra.mxu0 %v402
    %1220 = vmatprep.subr.bf16.mxu0 %v407
    %1221 = vmatpush1.bf16.msra.mxu0 %v406
    %1222 = vmatprep.subr.bf16.mxu0 %v411
    %1223 = vmatpush1.bf16.msra.mxu0 %v410
    %1224 = vmatprep.subr.bf16.mxu0 %v415
    %1225 = vmatpush1.bf16.msra.mxu0 %v414
    %1226 = vmatprep.subr.bf16.mxu0 %v419
    %1227 = vmatpush1.bf16.msra.mxu0 %v418
    %1228 = vmatprep.mubr.bf16.mxu0 %v85
    %1229 = vmatmul.mubr.bf16.gmra.mrb[0].mxu0 %v84
    %v1230 = vpop.f32.mrb[0].mxu0
    %v1231 = vadd.f32 0.0, %v1230
    %v1232 = vpop.f32.mrb[0].mxu0
    %v1233 = vadd.f32 0.0, %v1232
    %v1234 = vpop.f32.mrb[0].mxu0
    %v1235 = vpop.f32.mrb[0].mxu0
    %1236 = vdwg.mxu0
    %1237 = vmatprep.subr.bf16.mxu0 %v423
    %1238 = vmatpush1.bf16.msra.mxu0 %v422
    %1239 = vmatprep.subr.bf16.mxu0 %v427
    %1240 = vmatpush1.bf16.msra.mxu0 %v426
    %1241 = vmatprep.subr.bf16.mxu0 %v431
    %1242 = vmatpush1.bf16.msra.mxu0 %v430
    %1243 = vmatprep.subr.bf16.mxu0 %v435
    %1244 = vmatpush1.bf16.msra.mxu0 %v434
    %1245 = vmatprep.subr.bf16.mxu0 %v439
    %1246 = vmatpush1.bf16.msra.mxu0 %v438
    %1247 = vmatprep.subr.bf16.mxu0 %v443
    %1248 = vmatpush1.bf16.msra.mxu0 %v442
    %1249 = vmatprep.subr.bf16.mxu0 %v447
    %1250 = vmatpush1.bf16.msra.mxu0 %v446
    %1251 = vmatprep.subr.bf16.mxu0 %v451
    %1252 = vmatpush1.bf16.msra.mxu0 %v450
    %1253 = vmatprep.subr.bf16.mxu0 %v455
    %1254 = vmatpush1.bf16.msra.mxu0 %v454
    %1255 = vmatprep.subr.bf16.mxu0 %v459
    %1256 = vmatpush1.bf16.msra.mxu0 %v458
    %1257 = vmatprep.subr.bf16.mxu0 %v463
    %1258 = vmatpush1.bf16.msra.mxu0 %v462
    %1259 = vmatprep.subr.bf16.mxu0 %v467
    %1260 = vmatpush1.bf16.msra.mxu0 %v466
    %1261 = vmatprep.subr.bf16.mxu0 %v471
    %1262 = vmatpush1.bf16.msra.mxu0 %v470
    %1263 = vmatprep.subr.bf16.mxu0 %v475
    %1264 = vmatpush1.bf16.msra.mxu0 %v474
    %1265 = vmatprep.subr.bf16.mxu0 %v479
    %1266 = vmatpush1.bf16.msra.mxu0 %v478
    %1267 = vmatprep.subr.bf16.mxu0 %v483
    %1268 = vmatpush1.bf16.msra.mxu0 %v482
    %1269 = vmatprep.mubr.bf16.mxu0 %v87
    %1270 = vmatmul.mubr.bf16.gmra.mrb[0].mxu0 %v86
    %v1271 = vpop.f32.mrb[0].mxu0
    %v1272 = vadd.f32 %v1231, %v1271
    %v1273 = vpop.f32.mrb[0].mxu0
    %v1274 = vadd.f32 %v1233, %v1273
    %v1275 = vpop.f32.mrb[0].mxu0
    %v1276 = vpop.f32.mrb[0].mxu0
    %1277 = vdwg.mxu0
    %1278 = vmatprep.subr.bf16.mxu0 %v487
    %1279 = vmatpush1.bf16.msra.mxu0 %v486
    %1280 = vmatprep.subr.bf16.mxu0 %v491
    %1281 = vmatpush1.bf16.msra.mxu0 %v490
    %1282 = vmatprep.subr.bf16.mxu0 %v495
    %1283 = vmatpush1.bf16.msra.mxu0 %v494
    %1284 = vmatprep.subr.bf16.mxu0 %v499
    %1285 = vmatpush1.bf16.msra.mxu0 %v498
    %1286 = vmatprep.subr.bf16.mxu0 %v503
    %1287 = vmatpush1.bf16.msra.mxu0 %v502
    %1288 = vmatprep.subr.bf16.mxu0 %v507
    %1289 = vmatpush1.bf16.msra.mxu0 %v506
    %1290 = vmatprep.subr.bf16.mxu0 %v511
    %1291 = vmatpush1.bf16.msra.mxu0 %v510
    %1292 = vmatprep.subr.bf16.mxu0 %v515
    %1293 = vmatpush1.bf16.msra.mxu0 %v514
    %1294 = vmatprep.subr.bf16.mxu0 %v519
    %1295 = vmatpush1.bf16.msra.mxu0 %v518
    %1296 = vmatprep.subr.bf16.mxu0 %v523
    %1297 = vmatpush1.bf16.msra.mxu0 %v522
    %1298 = vmatprep.subr.bf16.mxu0 %v527
    %1299 = vmatpush1.bf16.msra.mxu0 %v526
    %1300 = vmatprep.subr.bf16.mxu0 %v531
    %1301 = vmatpush1.bf16.msra.mxu0 %v530
    %1302 = vmatprep.subr.bf16.mxu0 %v535
    %1303 = vmatpush1.bf16.msra.mxu0 %v534
    %1304 = vmatprep.subr.bf16.mxu0 %v539
    %1305 = vmatpush1.bf16.msra.mxu0 %v538
    %1306 = vmatprep.subr.bf16.mxu0 %v543
    %1307 = vmatpush1.bf16.msra.mxu0 %v542
    %1308 = vmatprep.subr.bf16.mxu0 %v547
    %1309 = vmatpush1.bf16.msra.mxu0 %v546
    %1310 = vmatprep.mubr.bf16.mxu0 %v89
    %1311 = vmatmul.mubr.bf16.gmra.mrb[0].mxu0 %v88
    %v1312 = vpop.f32.mrb[0].mxu0
    %v1313 = vadd.f32 %v1272, %v1312
    %v1314 = vpop.f32.mrb[0].mxu0
    %v1315 = vadd.f32 %v1274, %v1314
    %v1316 = vpop.f32.mrb[0].mxu0
    %v1317 = vpop.f32.mrb[0].mxu0
    %1318 = vdwg.mxu0
    %1319 = vmatprep.subr.bf16.mxu0 %v551
    %1320 = vmatpush1.bf16.msra.mxu0 %v550
    %1321 = vmatprep.subr.bf16.mxu0 %v555
    %1322 = vmatpush1.bf16.msra.mxu0 %v554
    %1323 = vmatprep.subr.bf16.mxu0 %v559
    %1324 = vmatpush1.bf16.msra.mxu0 %v558
    %1325 = vmatprep.subr.bf16.mxu0 %v563
    %1326 = vmatpush1.bf16.msra.mxu0 %v562
    %1327 = vmatprep.subr.bf16.mxu0 %v567
    %1328 = vmatpush1.bf16.msra.mxu0 %v566
    %1329 = vmatprep.subr.bf16.mxu0 %v571
    %1330 = vmatpush1.bf16.msra.mxu0 %v570
    %1331 = vmatprep.subr.bf16.mxu0 %v575
    %1332 = vmatpush1.bf16.msra.mxu0 %v574
    %1333 = vmatprep.subr.bf16.mxu0 %v579
    %1334 = vmatpush1.bf16.msra.mxu0 %v578
    %1335 = vmatprep.subr.bf16.mxu0 %v583
    %1336 = vmatpush1.bf16.msra.mxu0 %v582
    %1337 = vmatprep.subr.bf16.mxu0 %v587
    %1338 = vmatpush1.bf16.msra.mxu0 %v586
    %1339 = vmatprep.subr.bf16.mxu0 %v591
    %1340 = vmatpush1.bf16.msra.mxu0 %v590
    %1341 = vmatprep.subr.bf16.mxu0 %v595
    %1342 = vmatpush1.bf16.msra.mxu0 %v594
    %1343 = vmatprep.subr.bf16.mxu0 %v599
    %1344 = vmatpush1.bf16.msra.mxu0 %v598
    %1345 = vmatprep.subr.bf16.mxu0 %v603
    %1346 = vmatpush1.bf16.msra.mxu0 %v602
    %1347 = vmatprep.subr.bf16.mxu0 %v607
    %1348 = vmatpush1.bf16.msra.mxu0 %v606
    %1349 = vmatprep.subr.bf16.mxu0 %v611
    %1350 = vmatpush1.bf16.msra.mxu0 %v610
    %1351 = vmatprep.mubr.bf16.mxu0 %v91
    %1352 = vmatmul.mubr.bf16.gmra.mrb[0].mxu0 %v90
    %v1353 = vpop.f32.mrb[0].mxu0
    %v1354 = vadd.f32 %v1313, %v1353
    %v1355 = vpop.f32.mrb[0].mxu0
    %v1356 = vadd.f32 %v1315, %v1355
    %v1357 = vpop.f32.mrb[0].mxu0
    %v1358 = vpop.f32.mrb[0].mxu0
    %1359 = vdwg.mxu0
    %1360 = vmatprep.subr.bf16.mxu0 %v615
    %1361 = vmatpush1.bf16.msra.mxu0 %v614
    %1362 = vmatprep.subr.bf16.mxu0 %v619
    %1363 = vmatpush1.bf16.msra.mxu0 %v618
    %1364 = vmatprep.subr.bf16.mxu0 %v623
    %1365 = vmatpush1.bf16.msra.mxu0 %v622
    %1366 = vmatprep.subr.bf16.mxu0 %v627
    %1367 = vmatpush1.bf16.msra.mxu0 %v626
    %1368 = vmatprep.subr.bf16.mxu0 %v631
    %1369 = vmatpush1.bf16.msra.mxu0 %v630
    %1370 = vmatprep.subr.bf16.mxu0 %v635
    %1371 = vmatpush1.bf16.msra.mxu0 %v634
    %1372 = vmatprep.subr.bf16.mxu0 %v639
    %1373 = vmatpush1.bf16.msra.mxu0 %v638
    %1374 = vmatprep.subr.bf16.mxu0 %v643
    %1375 = vmatpush1.bf16.msra.mxu0 %v642
    %1376 = vmatprep.subr.bf16.mxu0 %v647
    %1377 = vmatpush1.bf16.msra.mxu0 %v646
    %1378 = vmatprep.subr.bf16.mxu0 %v651
    %1379 = vmatpush1.bf16.msra.mxu0 %v650
    %1380 = vmatprep.subr.bf16.mxu0 %v655
    %1381 = vmatpush1.bf16.msra.mxu0 %v654
    %1382 = vmatprep.subr.bf16.mxu0 %v659
    %1383 = vmatpush1.bf16.msra.mxu0 %v658
    %1384 = vmatprep.subr.bf16.mxu0 %v663
    %1385 = vmatpush1.bf16.msra.mxu0 %v662
    %1386 = vmatprep.subr.bf16.mxu0 %v667
    %1387 = vmatpush1.bf16.msra.mxu0 %v666
    %1388 = vmatprep.subr.bf16.mxu0 %v671
    %1389 = vmatpush1.bf16.msra.mxu0 %v670
    %1390 = vmatprep.subr.bf16.mxu0 %v675
    %1391 = vmatpush1.bf16.msra.mxu0 %v674
    %1392 = vmatprep.mubr.bf16.mxu0 %v93
    %1393 = vmatmul.mubr.bf16.gmra.mrb[0].mxu0 %v92
    %v1394 = vpop.f32.mrb[0].mxu0
    %v1395 = vadd.f32 %v1354, %v1394
    %v1396 = vpop.f32.mrb[0].mxu0
    %v1397 = vadd.f32 %v1356, %v1396
    %v1398 = vpop.f32.mrb[0].mxu0
    %v1399 = vpop.f32.mrb[0].mxu0
    %1400 = vdwg.mxu0
    %1401 = vmatprep.subr.bf16.mxu0 %v679
    %1402 = vmatpush1.bf16.msra.mxu0 %v678
    %1403 = vmatprep.subr.bf16.mxu0 %v683
    %1404 = vmatpush1.bf16.msra.mxu0 %v682
    %1405 = vmatprep.subr.bf16.mxu0 %v687
    %1406 = vmatpush1.bf16.msra.mxu0 %v686
    %1407 = vmatprep.subr.bf16.mxu0 %v691
    %1408 = vmatpush1.bf16.msra.mxu0 %v690
    %1409 = vmatprep.subr.bf16.mxu0 %v695
    %1410 = vmatpush1.bf16.msra.mxu0 %v694
    %1411 = vmatprep.subr.bf16.mxu0 %v699
    %1412 = vmatpush1.bf16.msra.mxu0 %v698
    %1413 = vmatprep.subr.bf16.mxu0 %v703
    %1414 = vmatpush1.bf16.msra.mxu0 %v702
    %1415 = vmatprep.subr.bf16.mxu0 %v707
    %1416 = vmatpush1.bf16.msra.mxu0 %v706
    %1417 = vmatprep.subr.bf16.mxu0 %v711
    %1418 = vmatpush1.bf16.msra.mxu0 %v710
    %1419 = vmatprep.subr.bf16.mxu0 %v715
    %1420 = vmatpush1.bf16.msra.mxu0 %v714
    %1421 = vmatprep.subr.bf16.mxu0 %v719
    %1422 = vmatpush1.bf16.msra.mxu0 %v718
    %1423 = vmatprep.subr.bf16.mxu0 %v723
    %1424 = vmatpush1.bf16.msra.mxu0 %v722
    %1425 = vmatprep.subr.bf16.mxu0 %v727
    %1426 = vmatpush1.bf16.msra.mxu0 %v726
    %1427 = vmatprep.subr.bf16.mxu0 %v731
    %1428 = vmatpush1.bf16.msra.mxu0 %v730
    %1429 = vmatprep.subr.bf16.mxu0 %v735
    %1430 = vmatpush1.bf16.msra.mxu0 %v734
    %1431 = vmatprep.subr.bf16.mxu0 %v739
    %1432 = vmatpush1.bf16.msra.mxu0 %v738
    %1433 = vmatprep.mubr.bf16.mxu0 %v95
    %1434 = vmatmul.mubr.bf16.gmra.mrb[0].mxu0 %v94
    %v1435 = vpop.f32.mrb[0].mxu0
    %v1436 = vadd.f32 %v1395, %v1435
    %v1437 = vpop.f32.mrb[0].mxu0
    %v1438 = vadd.f32 %v1397, %v1437
    %v1439 = vpop.f32.mrb[0].mxu0
    %v1440 = vpop.f32.mrb[0].mxu0
    %1441 = vdwg.mxu0
    %1442 = vmatprep.subr.bf16.mxu0 %v743
    %1443 = vmatpush1.bf16.msra.mxu0 %v742
    %1444 = vmatprep.subr.bf16.mxu0 %v747
    %1445 = vmatpush1.bf16.msra.mxu0 %v746
    %1446 = vmatprep.subr.bf16.mxu0 %v751
    %1447 = vmatpush1.bf16.msra.mxu0 %v750
    %1448 = vmatprep.subr.bf16.mxu0 %v755
    %1449 = vmatpush1.bf16.msra.mxu0 %v754
    %1450 = vmatprep.subr.bf16.mxu0 %v759
    %1451 = vmatpush1.bf16.msra.mxu0 %v758
    %1452 = vmatprep.subr.bf16.mxu0 %v763
    %1453 = vmatpush1.bf16.msra.mxu0 %v762
    %1454 = vmatprep.subr.bf16.mxu0 %v767
    %1455 = vmatpush1.bf16.msra.mxu0 %v766
    %1456 = vmatprep.subr.bf16.mxu0 %v771
    %1457 = vmatpush1.bf16.msra.mxu0 %v770
    %1458 = vmatprep.subr.bf16.mxu0 %v775
    %1459 = vmatpush1.bf16.msra.mxu0 %v774
    %1460 = vmatprep.subr.bf16.mxu0 %v779
    %1461 = vmatpush1.bf16.msra.mxu0 %v778
    %1462 = vmatprep.subr.bf16.mxu0 %v783
    %1463 = vmatpush1.bf16.msra.mxu0 %v782
    %1464 = vmatprep.subr.bf16.mxu0 %v787
    %1465 = vmatpush1.bf16.msra.mxu0 %v786
    %1466 = vmatprep.subr.bf16.mxu0 %v791
    %1467 = vmatpush1.bf16.msra.mxu0 %v790
    %1468 = vmatprep.subr.bf16.mxu0 %v795
    %1469 = vmatpush1.bf16.msra.mxu0 %v794
    %1470 = vmatprep.subr.bf16.mxu0 %v799
    %1471 = vmatpush1.bf16.msra.mxu0 %v798
    %1472 = vmatprep.subr.bf16.mxu0 %v803
    %1473 = vmatpush1.bf16.msra.mxu0 %v802
    %1474 = vmatprep.mubr.bf16.mxu0 %v97
    %1475 = vmatmul.mubr.bf16.gmra.mrb[0].mxu0 %v96
    %v1476 = vpop.f32.mrb[0].mxu0
    %v1477 = vadd.f32 %v1436, %v1476
    %v1478 = vpop.f32.mrb[0].mxu0
    %v1479 = vadd.f32 %v1438, %v1478
    %v1480 = vpop.f32.mrb[0].mxu0
    %v1481 = vpop.f32.mrb[0].mxu0
    %1482 = vdwg.mxu0
    %1483 = vmatprep.subr.bf16.mxu0 %v807
    %1484 = vmatpush1.bf16.msra.mxu0 %v806
    %1485 = vmatprep.subr.bf16.mxu0 %v811
    %1486 = vmatpush1.bf16.msra.mxu0 %v810
    %1487 = vmatprep.subr.bf16.mxu0 %v815
    %1488 = vmatpush1.bf16.msra.mxu0 %v814
    %1489 = vmatprep.subr.bf16.mxu0 %v819
    %1490 = vmatpush1.bf16.msra.mxu0 %v818
    %1491 = vmatprep.subr.bf16.mxu0 %v823
    %1492 = vmatpush1.bf16.msra.mxu0 %v822
    %1493 = vmatprep.subr.bf16.mxu0 %v827
    %1494 = vmatpush1.bf16.msra.mxu0 %v826
    %1495 = vmatprep.subr.bf16.mxu0 %v831
    %1496 = vmatpush1.bf16.msra.mxu0 %v830
    %1497 = vmatprep.subr.bf16.mxu0 %v835
    %1498 = vmatpush1.bf16.msra.mxu0 %v834
    %1499 = vmatprep.subr.bf16.mxu0 %v839
    %1500 = vmatpush1.bf16.msra.mxu0 %v838
    %1501 = vmatprep.subr.bf16.mxu0 %v843
    %1502 = vmatpush1.bf16.msra.mxu0 %v842
    %1503 = vmatprep.subr.bf16.mxu0 %v847
    %1504 = vmatpush1.bf16.msra.mxu0 %v846
    %1505 = vmatprep.subr.bf16.mxu0 %v851
    %1506 = vmatpush1.bf16.msra.mxu0 %v850
    %1507 = vmatprep.subr.bf16.mxu0 %v855
    %1508 = vmatpush1.bf16.msra.mxu0 %v854
    %1509 = vmatprep.subr.bf16.mxu0 %v859
    %1510 = vmatpush1.bf16.msra.mxu0 %v858
    %1511 = vmatprep.subr.bf16.mxu0 %v863
    %1512 = vmatpush1.bf16.msra.mxu0 %v862
    %1513 = vmatprep.subr.bf16.mxu0 %v867
    %1514 = vmatpush1.bf16.msra.mxu0 %v866
    %1515 = vmatprep.mubr.bf16.mxu0 %v99
    %1516 = vmatmul.mubr.bf16.gmra.mrb[0].mxu0 %v98
    %v1517 = vpop.f32.mrb[0].mxu0
    %v1518 = vadd.f32 %v1477, %v1517
    %v1519 = vpop.f32.mrb[0].mxu0
    %v1520 = vadd.f32 %v1479, %v1519
    %v1521 = vpop.f32.mrb[0].mxu0
    %v1522 = vpop.f32.mrb[0].mxu0
    %1523 = vdwg.mxu0
    %v1524 = vld [vmem:[#allocation7] sm:$0xf]
    %v1526 = vlaneseq
    %v1527 = vshrl.u32 %v1526, 7
    %v1528 = vsub.s32 0, %v1527
    %v1529 = vrot.slane %v1524, %v1528
    %v1530 = vlaneseq
    %v1531 = vshrl.u32 %v1530, 7
    %v1532 = vsub.s32 1, %v1531
    %v1533 = vrot.slane %v1524, %v1532
    %v1534 = vlaneseq
    %v1535 = vshrl.u32 %v1534, 7
    %v1536 = vsub.s32 2, %v1535
    %v1537 = vrot.slane %v1524, %v1536
    %v1538 = vlaneseq
    %v1539 = vshrl.u32 %v1538, 7
    %v1540 = vsub.s32 3, %v1539
    %v1541 = vrot.slane %v1524, %v1540
    %v1546 = vmul.f32 %v1190, %v1529
    %v1547 = vmul.f32 %v1192, %v1533
    %v1548 = vmul.f32 %v1518, %v1537
    %v1549 = vmul.f32 %v1520, %v1541
    %v1550 = vld [vmem:[#allocation7 + $0x4] sm:$0xf]
    %v1552 = vlaneseq
    %v1553 = vshrl.u32 %v1552, 7
    %v1554 = vsub.s32 0, %v1553
    %v1555 = vrot.slane %v1550, %v1554
    %v1556 = vlaneseq
    %v1557 = vshrl.u32 %v1556, 7
    %v1558 = vsub.s32 1, %v1557
    %v1559 = vrot.slane %v1550, %v1558
    %v1560 = vlaneseq
    %v1561 = vshrl.u32 %v1560, 7
    %v1562 = vsub.s32 2, %v1561
    %v1563 = vrot.slane %v1550, %v1562
    %v1564 = vlaneseq
    %v1565 = vshrl.u32 %v1564, 7
    %v1566 = vsub.s32 3, %v1565
    %v1567 = vrot.slane %v1550, %v1566
    %v1572 = vadd.f32 %v1546, %v1555
    %v1573 = vadd.f32 %v1547, %v1559
    %v1574 = vadd.f32 %v1548, %v1563
    %v1575 = vadd.f32 %v1549, %v1567
    %v1576 = vmax.f32 %v1572, 0.0
    %v1577 = vmax.f32 %v1573, 0.0
    %v1578 = vmax.f32 %v1574, 0.0
    %v1579 = vmax.f32 %v1575, 0.0
    %v1580 = vld [vmem:[#allocation6] sm:$0xff]
    %v1581 = vld [vmem:[#allocation6 + $0x8] sm:$0xff]
    %v1582 = vld [vmem:[#allocation6 + $0x10] sm:$0xff]
    %v1583 = vld [vmem:[#allocation6 + $0x18] sm:$0xff]
    %v1584 = vld [vmem:[#allocation6 + $0x20] sm:$0xff]
    %v1585 = vld [vmem:[#allocation6 + $0x28] sm:$0xff]
    %v1586 = vld [vmem:[#allocation6 + $0x30] sm:$0xff]
    %v1587 = vld [vmem:[#allocation6 + $0x38] sm:$0xff]
    %v1588 = vld [vmem:[#allocation6 + $0x40] sm:$0xff]
    %v1589 = vld [vmem:[#allocation6 + $0x48] sm:$0xff]
    %v1590 = vld [vmem:[#allocation6 + $0x50] sm:$0xff]
    %v1591 = vld [vmem:[#allocation6 + $0x58] sm:$0xff]
    %v1592 = vld [vmem:[#allocation6 + $0x60] sm:$0xff]
    %v1593 = vld [vmem:[#allocation6 + $0x68] sm:$0xff]
    %v1594 = vld [vmem:[#allocation6 + $0x70] sm:$0xff]
    %v1595 = vld [vmem:[#allocation6 + $0x78] sm:$0xff]
    %v1596 = vld [vmem:[#allocation6 + $0x80] sm:$0xff]
    %v1597 = vld [vmem:[#allocation6 + $0x88] sm:$0xff]
    %v1598 = vld [vmem:[#allocation6 + $0x90] sm:$0xff]
    %v1599 = vld [vmem:[#allocation6 + $0x98] sm:$0xff]
    %v1600 = vld [vmem:[#allocation6 + $0xa0] sm:$0xff]
    %v1601 = vld [vmem:[#allocation6 + $0xa8] sm:$0xff]
    %v1602 = vld [vmem:[#allocation6 + $0xb0] sm:$0xff]
    %v1603 = vld [vmem:[#allocation6 + $0xb8] sm:$0xff]
    %v1604 = vld [vmem:[#allocation6 + $0xc0] sm:$0xff]
    %v1605 = vld [vmem:[#allocation6 + $0xc8] sm:$0xff]
    %v1606 = vld [vmem:[#allocation6 + $0xd0] sm:$0xff]
    %v1607 = vld [vmem:[#allocation6 + $0xd8] sm:$0xff]
    %v1608 = vld [vmem:[#allocation6 + $0xe0] sm:$0xff]
    %v1609 = vld [vmem:[#allocation6 + $0xe8] sm:$0xff]
    %v1610 = vld [vmem:[#allocation6 + $0xf0] sm:$0xff]
    %v1611 = vld [vmem:[#allocation6 + $0xf8] sm:$0xff]
    %v1612 = vunpack.c.l.s8.bf16 %v1580
    %v1613 = vunpack.c.l.s8.bf16 %v1581
    %v1614 = vunpack.c.h.s8.bf16 %v1580
    %v1615 = vunpack.c.h.s8.bf16 %v1581
    %v1616 = vunpack.c.l.s8.bf16 %v1582
    %v1617 = vunpack.c.l.s8.bf16 %v1583
    %v1618 = vunpack.c.h.s8.bf16 %v1582
    %v1619 = vunpack.c.h.s8.bf16 %v1583
    %v1620 = vunpack.c.l.s8.bf16 %v1584
    %v1621 = vunpack.c.l.s8.bf16 %v1585
    %v1622 = vunpack.c.h.s8.bf16 %v1584
    %v1623 = vunpack.c.h.s8.bf16 %v1585
    %v1624 = vunpack.c.l.s8.bf16 %v1586
    %v1625 = vunpack.c.l.s8.bf16 %v1587
    %v1626 = vunpack.c.h.s8.bf16 %v1586
    %v1627 = vunpack.c.h.s8.bf16 %v1587
    %v1628 = vunpack.c.l.s8.bf16 %v1588
    %v1629 = vunpack.c.l.s8.bf16 %v1589
    %v1630 = vunpack.c.h.s8.bf16 %v1588
    %v1631 = vunpack.c.h.s8.bf16 %v1589
    %v1632 = vunpack.c.l.s8.bf16 %v1590
    %v1633 = vunpack.c.l.s8.bf16 %v1591
    %v1634 = vunpack.c.h.s8.bf16 %v1590
    %v1635 = vunpack.c.h.s8.bf16 %v1591
    %v1636 = vunpack.c.l.s8.bf16 %v1592
    %v1637 = vunpack.c.l.s8.bf16 %v1593
    %v1638 = vunpack.c.h.s8.bf16 %v1592
    %v1639 = vunpack.c.h.s8.bf16 %v1593
    %v1640 = vunpack.c.l.s8.bf16 %v1594
    %v1641 = vunpack.c.l.s8.bf16 %v1595
    %v1642 = vunpack.c.h.s8.bf16 %v1594
    %v1643 = vunpack.c.h.s8.bf16 %v1595
    %v1644 = vunpack.c.l.s8.bf16 %v1596
    %v1645 = vunpack.c.l.s8.bf16 %v1597
    %v1646 = vunpack.c.h.s8.bf16 %v1596
    %v1647 = vunpack.c.h.s8.bf16 %v1597
    %v1648 = vunpack.c.l.s8.bf16 %v1598
    %v1649 = vunpack.c.l.s8.bf16 %v1599
    %v1650 = vunpack.c.h.s8.bf16 %v1598
    %v1651 = vunpack.c.h.s8.bf16 %v1599
    %v1652 = vunpack.c.l.s8.bf16 %v1600
    %v1653 = vunpack.c.l.s8.bf16 %v1601
    %v1654 = vunpack.c.h.s8.bf16 %v1600
    %v1655 = vunpack.c.h.s8.bf16 %v1601
    %v1656 = vunpack.c.l.s8.bf16 %v1602
    %v1657 = vunpack.c.l.s8.bf16 %v1603
    %v1658 = vunpack.c.h.s8.bf16 %v1602
    %v1659 = vunpack.c.h.s8.bf16 %v1603
    %v1660 = vunpack.c.l.s8.bf16 %v1604
    %v1661 = vunpack.c.l.s8.bf16 %v1605
    %v1662 = vunpack.c.h.s8.bf16 %v1604
    %v1663 = vunpack.c.h.s8.bf16 %v1605
    %v1664 = vunpack.c.l.s8.bf16 %v1606
    %v1665 = vunpack.c.l.s8.bf16 %v1607
    %v1666 = vunpack.c.h.s8.bf16 %v1606
    %v1667 = vunpack.c.h.s8.bf16 %v1607
    %v1668 = vunpack.c.l.s8.bf16 %v1608
    %v1669 = vunpack.c.l.s8.bf16 %v1609
    %v1670 = vunpack.c.h.s8.bf16 %v1608
    %v1671 = vunpack.c.h.s8.bf16 %v1609
    %v1672 = vunpack.c.l.s8.bf16 %v1610
    %v1673 = vunpack.c.l.s8.bf16 %v1611
    %v1674 = vunpack.c.h.s8.bf16 %v1610
    %v1675 = vunpack.c.h.s8.bf16 %v1611
    %v1676 = vpack.c.bf16 %v1576, %v1576
    %v1677 = vpack.c.bf16 %v1577, %v1577
    %v1678 = vpack.c.bf16 %v1578, %v1578
    %v1679 = vpack.c.bf16 %v1579, %v1579
    %1680 = vmatprep.subr.bf16.mxu0 %v1613
    %1681 = vmatpush1.bf16.msra.mxu0 %v1612
    %1682 = vmatprep.subr.bf16.mxu0 %v1615
    %1683 = vmatpush1.bf16.msra.mxu0 %v1614
    %1684 = vmatprep.subr.bf16.mxu0 %v1617
    %1685 = vmatpush1.bf16.msra.mxu0 %v1616
    %1686 = vmatprep.subr.bf16.mxu0 %v1619
    %1687 = vmatpush1.bf16.msra.mxu0 %v1618
    %1688 = vmatprep.subr.bf16.mxu0 %v1621
    %1689 = vmatpush1.bf16.msra.mxu0 %v1620
    %1690 = vmatprep.subr.bf16.mxu0 %v1623
    %1691 = vmatpush1.bf16.msra.mxu0 %v1622
    %1692 = vmatprep.subr.bf16.mxu0 %v1625
    %1693 = vmatpush1.bf16.msra.mxu0 %v1624
    %1694 = vmatprep.subr.bf16.mxu0 %v1627
    %1695 = vmatpush1.bf16.msra.mxu0 %v1626
    %1696 = vmatprep.subr.bf16.mxu0 %v1629
    %1697 = vmatpush1.bf16.msra.mxu0 %v1628
    %1698 = vmatprep.subr.bf16.mxu0 %v1631
    %1699 = vmatpush1.bf16.msra.mxu0 %v1630
    %1700 = vmatprep.subr.bf16.mxu0 %v1633
    %1701 = vmatpush1.bf16.msra.mxu0 %v1632
    %1702 = vmatprep.subr.bf16.mxu0 %v1635
    %1703 = vmatpush1.bf16.msra.mxu0 %v1634
    %1704 = vmatprep.subr.bf16.mxu0 %v1637
    %1705 = vmatpush1.bf16.msra.mxu0 %v1636
    %1706 = vmatprep.subr.bf16.mxu0 %v1639
    %1707 = vmatpush1.bf16.msra.mxu0 %v1638
    %1708 = vmatprep.subr.bf16.mxu0 %v1641
    %1709 = vmatpush1.bf16.msra.mxu0 %v1640
    %1710 = vmatprep.subr.bf16.mxu0 %v1643
    %1711 = vmatpush1.bf16.msra.mxu0 %v1642
    %1712 = vmatprep.mubr.bf16.mxu0 %v1677
    %1713 = vmatmul.mubr.bf16.gmra.mrb[0].mxu0 %v1676
    %v1714 = vpop.f32.mrb[0].mxu0
    %v1715 = vadd.f32 0.0, %v1714
    %v1716 = vpop.f32.mrb[0].mxu0
    %v1717 = vadd.f32 0.0, %v1716
    %v1718 = vpop.f32.mrb[0].mxu0
    %v1719 = vpop.f32.mrb[0].mxu0
    %1720 = vdwg.mxu0
    %1721 = vmatprep.subr.bf16.mxu0 %v1645
    %1722 = vmatpush1.bf16.msra.mxu0 %v1644
    %1723 = vmatprep.subr.bf16.mxu0 %v1647
    %1724 = vmatpush1.bf16.msra.mxu0 %v1646
    %1725 = vmatprep.subr.bf16.mxu0 %v1649
    %1726 = vmatpush1.bf16.msra.mxu0 %v1648
    %1727 = vmatprep.subr.bf16.mxu0 %v1651
    %1728 = vmatpush1.bf16.msra.mxu0 %v1650
    %1729 = vmatprep.subr.bf16.mxu0 %v1653
    %1730 = vmatpush1.bf16.msra.mxu0 %v1652
    %1731 = vmatprep.subr.bf16.mxu0 %v1655
    %1732 = vmatpush1.bf16.msra.mxu0 %v1654
    %1733 = vmatprep.subr.bf16.mxu0 %v1657
    %1734 = vmatpush1.bf16.msra.mxu0 %v1656
    %1735 = vmatprep.subr.bf16.mxu0 %v1659
    %1736 = vmatpush1.bf16.msra.mxu0 %v1658
    %1737 = vmatprep.subr.bf16.mxu0 %v1661
    %1738 = vmatpush1.bf16.msra.mxu0 %v1660
    %1739 = vmatprep.subr.bf16.mxu0 %v1663
    %1740 = vmatpush1.bf16.msra.mxu0 %v1662
    %1741 = vmatprep.subr.bf16.mxu0 %v1665
    %1742 = vmatpush1.bf16.msra.mxu0 %v1664
    %1743 = vmatprep.subr.bf16.mxu0 %v1667
    %1744 = vmatpush1.bf16.msra.mxu0 %v1666
    %1745 = vmatprep.subr.bf16.mxu0 %v1669
    %1746 = vmatpush1.bf16.msra.mxu0 %v1668
    %1747 = vmatprep.subr.bf16.mxu0 %v1671
    %1748 = vmatpush1.bf16.msra.mxu0 %v1670
    %1749 = vmatprep.subr.bf16.mxu0 %v1673
    %1750 = vmatpush1.bf16.msra.mxu0 %v1672
    %1751 = vmatprep.subr.bf16.mxu0 %v1675
    %1752 = vmatpush1.bf16.msra.mxu0 %v1674
    %1753 = vmatprep.mubr.bf16.mxu0 %v1679
    %1754 = vmatmul.mubr.bf16.gmra.mrb[0].mxu0 %v1678
    %v1755 = vpop.f32.mrb[0].mxu0
    %v1756 = vadd.f32 %v1715, %v1755
    %v1757 = vpop.f32.mrb[0].mxu0
    %v1758 = vadd.f32 %v1717, %v1757
    %v1759 = vpop.f32.mrb[0].mxu0
    %v1760 = vpop.f32.mrb[0].mxu0
    %1761 = vdwg.mxu0
    %v1762 = vld [vmem:[#allocation7 + $0x8] sm:$0x3]
    %v1764 = vlaneseq
    %v1765 = vshrl.u32 %v1764, 7
    %v1766 = vsub.s32 0, %v1765
    %v1767 = vrot.slane %v1762, %v1766
    %v1768 = vlaneseq
    %v1769 = vshrl.u32 %v1768, 7
    %v1770 = vsub.s32 1, %v1769
    %v1771 = vrot.slane %v1762, %v1770
    %v1774 = vmul.f32 %v1756, %v1767
    %v1775 = vmul.f32 %v1758, %v1771
    %v1776 = vld [vmem:[#allocation7 + $0xa] sm:$0x3]
    %v1778 = vlaneseq
    %v1779 = vshrl.u32 %v1778, 7
    %v1780 = vsub.s32 0, %v1779
    %v1781 = vrot.slane %v1776, %v1780
    %v1782 = vlaneseq
    %v1783 = vshrl.u32 %v1782, 7
    %v1784 = vsub.s32 1, %v1783
    %v1785 = vrot.slane %v1776, %v1784
    %v1788 = vadd.f32 %v1774, %v1781
    %v1789 = vadd.f32 %v1775, %v1785
    %v1790 = vmax.f32 %v1788, 0.0
    %v1791 = vmax.f32 %v1789, 0.0
    %v1792 = vld [vmem:[#allocation7 + $0xc] sm:$0x3]
    %v1793 = vld [vmem:[#allocation7 + $0xe] sm:$0x1]
    %v1795 = vlaneseq
    %v1796 = vshrl.u32 %v1795, 7
    %v1797 = vsub.s32 0, %v1796
    %v1798 = vrot.slane %v1792, %v1797
    %v1799 = vlaneseq
    %v1800 = vshrl.u32 %v1799, 7
    %v1801 = vsub.s32 1, %v1800
    %v1802 = vrot.slane %v1792, %v1801
    %v1805 = vmul.f32 %v1790, %v1798
    %v1806 = vmul.f32 %v1791, %v1802
    %v1807 = vadd.f32 %v1805, %v1806
    %1808 = vadd.xlane.f32.xlu0 %v1807
    %v1809 = vpop.xlane.xlu0 %1808
    %v1811 = vlaneseq
    %v1812 = vshrl.u32 %v1811, 7
    %v1813 = vsub.s32 0, %v1812
    %v1814 = vrot.slane %v1793, %v1813
    %v1816 = vadd.f32 %v1809, %v1814
    %v1817 = vand.u32 2147483647, %v1816
    %v1818 = vsub.f32 0.0, %v1817
    %v1819 = vmul.f32 %v1818, 1.442695
    %v1820 = vpow.pop %v1819
    %vm1821 = vcmp.ge.f32.partialorder %v1816, 0.0
    %v1822 = vadd.f32 %v1820, 1.0
    %v1823 = vrcp.pop %v1822
    %v1824 = vmul.f32 1.0, %v1823
    %v1825 = vmul.f32 %v1820, %v1823
    %v1826 = vsel %vm1821, %v1824, %v1825
    %vm1827 = vcmask 7168
    %1828 = vst.msk [vmem:[%s4] sm:$0xff] %vm1827, %v1826
    // Predicated region
    $region34: #{inception_binary_classifier_forward.1} parent=1 // pred_check
      _
    $region35: #{inception_binary_classifier_forward.1} parent=1 // pred_check_branch
      %1830 = sbr.rel (0) target = $region37
    $region36: #{inception_binary_classifier_forward.1} parent=1 // pred_region
      _
    $region37: #{inception_binary_classifier_forward.1} parent=1 // pred_fallthru
      _
    // Predicated region
    $region38: #{inception_binary_classifier_forward.1} parent=1 // pred_check
      _
    $region39: #{inception_binary_classifier_forward.1} parent=1 // pred_check_branch
      %1832 = sbr.rel (0) target = $region41
    $region40: #{inception_binary_classifier_forward.1} parent=1 // pred_region
      _
    $region41: #{inception_binary_classifier_forward.1} parent=1 // pred_fallthru
      _
    %1833 = vsyncpa [#allocation3], 1
    %1834 = vsyncpa [#allocation5], 1
    %1835 = vsyncpa [#allocation8], 1

</llo_original>
